<compile_context>
chip_gen: v6e
topology: v6e:2x2x1
jax: 0.10.0
libtpu: 0.0.40
codegen_flags: <defaults>
</compile_context>

<pallas_src>
import functools

import jax
import jax.numpy as jnp
from jax import lax
from jax.experimental import pallas as pl
from jax.experimental.pallas import tpu as pltpu


_VMEM_LIMIT_BYTES = 48 * 1024 * 1024   # < 64 MiB physical VMEM on v7x
_TILE_VMEM_BUDGET = 32 * 1024 * 1024   # working-set budget used for tile sizing


def _round_up(x, m):
    return (x + m - 1) // m * m


def _sublane_pack(dtype):
    # f32 -> 8 rows, bf16 -> 16, int8/fp8 -> 32 (native sublane packing).
    return {1: 32, 2: 16}.get(jnp.dtype(dtype).itemsize, 8)


def _pick_row_tile(m_rows, k_dim, c_dim, dtype):
    """Largest packing-aligned row tile whose double-buffered working set
    (lhs + skip + outputs) stays well under the scoped-VMEM budget."""
    pack = _sublane_pack(dtype)
    itemsize = max(jnp.dtype(dtype).itemsize, 4)
    per_row = 2 * (k_dim + 3 * c_dim) * itemsize          # 2x = double buffering
    tm = max(pack, min(2048, _TILE_VMEM_BUDGET // max(per_row, 1)))
    tm = (tm // pack) * pack
    tm = min(tm, _round_up(m_rows, pack))
    return max(tm, pack)


def _pad_rows(x2d, rows_pad):
    m = x2d.shape[0]
    if rows_pad == m:
        return x2d
    return jnp.pad(x2d, ((0, rows_pad - m), (0, 0)))


def _im2col_nhwc(x_nhwc, ksize):
    """'SAME'-padded k x k im2col: (N,H,W,C) -> (N*H*W, k*k*C).
    Flattened K index runs (dy, dx, c_in), matching an HWIO weight reshape."""
    n, h, w, c = x_nhwc.shape
    p = ksize // 2
    xp = jnp.pad(x_nhwc, ((0, 0), (p, p), (p, p), (0, 0)))
    cols = [xp[:, dy:dy + h, dx:dx + w, :]
            for dy in range(ksize) for dx in range(ksize)]
    return jnp.concatenate(cols, axis=-1).reshape(n * h * w, ksize * ksize * c)


def _nbytes(*arrs):
    return int(sum(int(a.size) * jnp.dtype(a.dtype).itemsize for a in arrs))


# ----------------------------- Pallas kernels ------------------------------


def _conv_bias_relu_kernel(lhs_ref, rhs_ref, bias_ref, o_ref):
    # conv1 as matmul on the MXU, bias add + ReLU fused (VPU).
    acc = jnp.dot(lhs_ref[...], rhs_ref[...], preferred_element_type=jnp.float32)
    acc = acc + bias_ref[...]
    o_ref[...] = jnp.maximum(acc, 0.0).astype(o_ref.dtype)


def _conv_bias_res_ssq_kernel(lhs_ref, rhs_ref, bias_ref, skip_ref,
                              res_ref, ssq_ref,
                              *, res_scale, valid_rows, tile_rows):
    # conv2 matmul + bias, res_scale, residual add, and a per-tile
    # sum-of-squares partial (kept per-tile so the grid stays "parallel").
    acc = jnp.dot(lhs_ref[...], rhs_ref[...], preferred_element_type=jnp.float32)
    out = (acc + bias_ref[...]) * res_scale + skip_ref[...].astype(jnp.float32)

    if valid_rows % tile_rows != 0:  # static: only emitted when row padding exists
        row0 = pl.program_id(0) * tile_rows
        ridx = lax.broadcasted_iota(jnp.int32, out.shape, 0) + row0
        out = jnp.where(ridx < valid_rows, out, 0.0)

    res_ref[...] = out.astype(res_ref.dtype)
    ssq_ref[...] = jnp.sum(out * out).reshape(1, 1, 1)


def _scale_kernel(scale_ref, x_ref, o_ref):
    # feat = res * (1 / ||res||_2); scalar lives in SMEM.
    o_ref[...] = (x_ref[...].astype(jnp.float32) * scale_ref[0]).astype(o_ref.dtype)


# ----------------------------- pallas_call glue -----------------------------


def _conv_bias_relu(patches, w2d, bias2d, out_dtype):
    m, k_dim = patches.shape
    c_out = w2d.shape[1]
    tm = _pick_row_tile(m, k_dim, c_out, out_dtype)
    m_pad = _round_up(m, tm)
    patches = _pad_rows(patches, m_pad)

    out_bytes = m_pad * c_out * jnp.dtype(out_dtype).itemsize
    y = pl.pallas_call(
        _conv_bias_relu_kernel,
        out_shape=jax.ShapeDtypeStruct((m_pad, c_out), out_dtype),
        grid=(m_pad // tm,),
        in_specs=[
            pl.BlockSpec((tm, k_dim), lambda i: (i, 0)),
            pl.BlockSpec((k_dim, c_out), lambda i: (0, 0)),
            pl.BlockSpec((1, c_out), lambda i: (0, 0)),
        ],
        out_specs=pl.BlockSpec((tm, c_out), lambda i: (i, 0)),
        compiler_params=pltpu.CompilerParams(
            dimension_semantics=("parallel",),
            vmem_limit_bytes=_VMEM_LIMIT_BYTES,
        ),
        cost_estimate=pl.CostEstimate(
            flops=2 * m_pad * k_dim * c_out,
            transcendentals=0,
            bytes_accessed=_nbytes(patches, w2d, bias2d) + out_bytes,
        ),
    )(patches, w2d, bias2d)
    return y[:m]


def _conv_bias_residual(patches, w2d, bias2d, skip2d, res_scale, out_dtype):
    m, k_dim = patches.shape
    c_out = w2d.shape[1]
    tm = _pick_row_tile(m, k_dim, c_out, out_dtype)
    m_pad = _round_up(m, tm)
    patches = _pad_rows(patches, m_pad)
    skip2d = _pad_rows(skip2d, m_pad)
    num_tiles = m_pad // tm

    kernel = functools.partial(
        _conv_bias_res_ssq_kernel,
        res_scale=float(res_scale), valid_rows=m, tile_rows=tm)

    out_bytes = m_pad * c_out * jnp.dtype(out_dtype).itemsize + 4 * num_tiles
    res2d, ssq_parts = pl.pallas_call(
        kernel,
        out_shape=(
            jax.ShapeDtypeStruct((m_pad, c_out), out_dtype),
            jax.ShapeDtypeStruct((num_tiles, 1, 1), jnp.float32),
        ),
        grid=(num_tiles,),
        in_specs=[
            pl.BlockSpec((tm, k_dim), lambda i: (i, 0)),
            pl.BlockSpec((k_dim, c_out), lambda i: (0, 0)),
            pl.BlockSpec((1, c_out), lambda i: (0, 0)),
            pl.BlockSpec((tm, c_out), lambda i: (i, 0)),
        ],
        out_specs=(
            pl.BlockSpec((tm, c_out), lambda i: (i, 0)),
            pl.BlockSpec((1, 1, 1), lambda i: (i, 0, 0)),   # per-tile ssq partial
        ),
        compiler_params=pltpu.CompilerParams(
            dimension_semantics=("parallel",),
            vmem_limit_bytes=_VMEM_LIMIT_BYTES,
        ),
        cost_estimate=pl.CostEstimate(
            flops=2 * m_pad * k_dim * c_out,
            transcendentals=0,
            bytes_accessed=_nbytes(patches, w2d, bias2d, skip2d) + out_bytes,
        ),
    )(patches, w2d, bias2d, skip2d)
    return res2d, jnp.sum(ssq_parts), tm


def _scale_by_scalar(x2d_pad, scale, tm, out_dtype):
    m_pad, c = x2d_pad.shape
    scale_arr = jnp.reshape(scale, (1,)).astype(jnp.float32)
    return pl.pallas_call(
        _scale_kernel,
        out_shape=jax.ShapeDtypeStruct((m_pad, c), out_dtype),
        grid=(m_pad // tm,),
        in_specs=[
            pl.BlockSpec(memory_space=pltpu.MemorySpace.SMEM),
            pl.BlockSpec((tm, c), lambda i: (i, 0)),
        ],
        out_specs=pl.BlockSpec((tm, c), lambda i: (i, 0)),
        compiler_params=pltpu.CompilerParams(
            dimension_semantics=("parallel",),
            vmem_limit_bytes=_VMEM_LIMIT_BYTES,
        ),
    )(scale_arr, x2d_pad)


# ------------------------------- ResBlock -----------------------------------


def resblock_forward(x, feat, bit, w1, b1, w2, b2, *, res_scale=1.0):
    """Pallas ResBlock.forward for x_list = [x, feat, bit] (args.imgwise=False).

    x: (N, C, H, W) NCHW; w1/w2: (k, k, C, C) HWIO; b1/b2: (C,).
    Returns (res, feat_out, bit) matching the PyTorch module's [res, feat, bit].
    """
    n, c, h, w_sp = x.shape
    ksize = w1.shape[0]
    m = n * h * w_sp

    x_nhwc = jnp.transpose(x, (0, 2, 3, 1))
    skip2d = x_nhwc.reshape(m, c)          # residual read once, inside conv2 kernel

    w1_2d = w1.reshape(ksize * ksize * c, c)
    w2_2d = w2.reshape(ksize * ksize * c, c)
    b1_2d = b1.reshape(1, c).astype(jnp.float32)
    b2_2d = b2.reshape(1, c).astype(jnp.float32)

    # conv1 + bias + ReLU (fused)
    patches1 = _im2col_nhwc(x_nhwc, ksize)
    y1 = _conv_bias_relu(patches1, w1_2d, b1_2d, x.dtype)               # (m, c)

    # conv2 + bias, * res_scale, + residual, fused per-tile sum-of-squares
    patches2 = _im2col_nhwc(y1.reshape(n, h, w_sp, c), ksize)
    res2d_pad, ssq, tm = _conv_bias_residual(
        patches2, w2_2d, b2_2d, skip2d, res_scale, x.dtype)

    # feat = res / ||res||_2   (global Frobenius norm, torch.norm(res, p=2))
    inv_norm = lax.rsqrt(ssq)
    feat2d_pad = _scale_by_scalar(res2d_pad, inv_norm, tm, x.dtype)

    res = jnp.transpose(res2d_pad[:m].reshape(n, h, w_sp, c), (0, 3, 1, 2))
    feat_new = jnp.transpose(feat2d_pad[:m].reshape(n, h, w_sp, c), (0, 3, 1, 2))
    feat_out = feat_new if feat is None else jnp.concatenate([feat, feat_new], axis=0)

    return res, feat_out, bit


if __name__ == "__main__":
    key = jax.random.PRNGKey(0)
    k_x, k_w1, k_b1, k_w2, k_b2 = jax.random.split(key, 5)

    n, c, h, w_sp, ksize = 2, 4, 16, 16, 3
    x = jax.random.normal(k_x, (n, c, h, w_sp), dtype=jnp.float32)
    w1 = jax.random.normal(k_w1, (ksize, ksize, c, c), dtype=jnp.float32) * 0.1
    b1 = jax.random.normal(k_b1, (c,), dtype=jnp.float32) * 0.1
    w2 = jax.random.normal(k_w2, (ksize, ksize, c, c), dtype=jnp.float32) * 0.1
    b2 = jax.random.normal(k_b2, (c,), dtype=jnp.float32) * 0.1
    bit = jnp.int32(8)

    fwd = jax.jit(functools.partial(resblock_forward, res_scale=1.0))
    res, feat, bit_out = fwd(x, None, bit, w1, b1, w2, b2)
    res, feat = jax.block_until_ready((res, feat))

    # Reference (same im2col + matmul formulation in plain JAX). Loose tolerance:
    # the MXU may decompose f32 matmuls into bf16 passes.
    x_nhwc = jnp.transpose(x, (0, 2, 3, 1))
    p1 = _im2col_nhwc(x_nhwc, ksize)
    y1_ref = jnp.maximum(p1 @ w1.reshape(-1, c) + b1, 0.0)
    p2 = _im2col_nhwc(y1_ref.reshape(n, h, w_sp, c), ksize)
    res2d_ref = (p2 @ w2.reshape(-1, c) + b2) * 1.0 + x_nhwc.reshape(-1, c)
    res_ref = jnp.transpose(res2d_ref.reshape(n, h, w_sp, c), (0, 3, 1, 2))
    feat_ref = res_ref / jnp.sqrt(jnp.sum(res_ref * res_ref))

    assert res.shape == x.shape and feat.shape == x.shape
    assert res.dtype == x.dtype and feat.dtype == x.dtype
    assert bool(jnp.all(jnp.isfinite(res))) and bool(jnp.all(jnp.isfinite(feat)))
    assert bool(jnp.allclose(res, res_ref, rtol=5e-2, atol=5e-2))
    assert bool(jnp.allclose(feat, feat_ref, rtol=5e-2, atol=5e-2))

    print("KERNEL_OK")
</pallas_src>

<mosaic_0001>
module attributes {stable_mosaic.version = 11 : i64} {
  func.func @_conv_bias_relu_kernel(%arg0: i32, %arg1: memref<512x36xf32, #tpu.memory_space<vmem>>, %arg2: memref<36x4xf32, #tpu.memory_space<vmem>>, %arg3: memref<1x4xf32, #tpu.memory_space<vmem>>, %arg4: memref<512x4xf32, #tpu.memory_space<vmem>>) attributes {dimension_semantics = [#tpu.dimension_semantics<parallel>], iteration_bounds = array<i64: 1>, scalar_prefetch = 0 : i64, scratch_operands = 0 : i64, tpu.core_type = #tpu.core_type<tc>, window_params = [{transform_indices = @transform_0, window_bounds = array<i64: 512, 36>}, {pipeline_mode = #tpu.pipeline_mode<synchronous>, transform_indices = @transform_1, window_bounds = array<i64: 36, 4>}, {pipeline_mode = #tpu.pipeline_mode<synchronous>, transform_indices = @transform_2, window_bounds = array<i64: 1, 4>}, {transform_indices = @transform_3, window_bounds = array<i64: 512, 4>}]} {
    %c0 = arith.constant 0 : index
    %c0_0 = arith.constant 0 : index
    %0 = vector.load %arg1[%c0, %c0_0] : memref<512x36xf32, #tpu.memory_space<vmem>>, vector<512x36xf32>
    %c0_1 = arith.constant 0 : index
    %c0_2 = arith.constant 0 : index
    %1 = vector.load %arg2[%c0_1, %c0_2] : memref<36x4xf32, #tpu.memory_space<vmem>>, vector<36x4xf32>
    %cst = arith.constant dense<0.000000e+00> : vector<512x4xf32>
    %2 = tpu.matmul %0, %1, %cst {dimension_numbers = #tpu.dot_dimension_numbers<[1], [0], [0], [1], [0, 0, 1, 1], [], []>} : vector<512x36xf32>, vector<36x4xf32>, vector<512x4xf32> -> vector<512x4xf32>
    %c0_3 = arith.constant 0 : index
    %c0_4 = arith.constant 0 : index
    %3 = vector.load %arg3[%c0_3, %c0_4] : memref<1x4xf32, #tpu.memory_space<vmem>>, vector<1x4xf32>
    %4 = vector.broadcast %3 : vector<1x4xf32> to vector<512x4xf32>
    %5 = arith.addf %2, %4 : vector<512x4xf32>
    %cst_5 = arith.constant 0.000000e+00 : f32
    %6 = vector.broadcast %cst_5 : f32 to vector<512x4xf32>
    %7 = arith.maximumf %5, %6 : vector<512x4xf32>
    %c0_6 = arith.constant 0 : index
    %c0_7 = arith.constant 0 : index
    %8 = vector.load %arg4[%c0_6, %c0_7] : memref<512x4xf32, #tpu.memory_space<vmem>>, vector<512x4xf32>
    tpu.vector_store %arg4[%c0_6, %c0_7], %7 {strides = array<i32>} : memref<512x4xf32, #tpu.memory_space<vmem>>, vector<512x4xf32>,
    return
  }
  func.func @transform_0(%arg0: i32) -> (i32, i32) {
    %c0_i32 = arith.constant 0 : i32
    %c0_i32_0 = arith.constant 0 : i32
    return %arg0, %c0_i32 : i32, i32
  }
  func.func @transform_1(%arg0: i32) -> (i32, i32) {
    %c0_i32 = arith.constant 0 : i32
    %c0_i32_0 = arith.constant 0 : i32
    %c0_i32_1 = arith.constant 0 : i32
    return %c0_i32, %c0_i32_0 : i32, i32
  }
  func.func @transform_2(%arg0: i32) -> (i32, i32) {
    %c0_i32 = arith.constant 0 : i32
    %c0_i32_0 = arith.constant 0 : i32
    %c0_i32_1 = arith.constant 0 : i32
    return %c0_i32, %c0_i32_0 : i32, i32
  }
  func.func @transform_3(%arg0: i32) -> (i32, i32) {
    %c0_i32 = arith.constant 0 : i32
    %c0_i32_0 = arith.constant 0 : i32
    return %arg0, %c0_i32 : i32, i32
  }
}

module attributes {stable_mosaic.version = 11 : i64} {
  func.func @_conv_bias_res_ssq_kernel(%arg0: i32, %arg1: memref<512x36xf32, #tpu.memory_space<vmem>>, %arg2: memref<36x4xf32, #tpu.memory_space<vmem>>, %arg3: memref<1x4xf32, #tpu.memory_space<vmem>>, %arg4: memref<512x4xf32, #tpu.memory_space<vmem>>, %arg5: memref<512x4xf32, #tpu.memory_space<vmem>>, %arg6: memref<1x1x1xf32, #tpu.memory_space<vmem>>) attributes {dimension_semantics = [#tpu.dimension_semantics<parallel>], iteration_bounds = array<i64: 1>, scalar_prefetch = 0 : i64, scratch_operands = 0 : i64, tpu.core_type = #tpu.core_type<tc>, window_params = [{transform_indices = @transform_0, window_bounds = array<i64: 512, 36>}, {pipeline_mode = #tpu.pipeline_mode<synchronous>, transform_indices = @transform_1, window_bounds = array<i64: 36, 4>}, {pipeline_mode = #tpu.pipeline_mode<synchronous>, transform_indices = @transform_2, window_bounds = array<i64: 1, 4>}, {transform_indices = @transform_3, window_bounds = array<i64: 512, 4>}, {transform_indices = @transform_4, window_bounds = array<i64: 512, 4>}, {transform_indices = @transform_5, window_bounds = array<i64: 1, 1, 1>}]} {
    %c0 = arith.constant 0 : index
    %c0_0 = arith.constant 0 : index
    %0 = vector.load %arg1[%c0, %c0_0] : memref<512x36xf32, #tpu.memory_space<vmem>>, vector<512x36xf32>
    %c0_1 = arith.constant 0 : index
    %c0_2 = arith.constant 0 : index
    %1 = vector.load %arg2[%c0_1, %c0_2] : memref<36x4xf32, #tpu.memory_space<vmem>>, vector<36x4xf32>
    %cst = arith.constant dense<0.000000e+00> : vector<512x4xf32>
    %2 = tpu.matmul %0, %1, %cst {dimension_numbers = #tpu.dot_dimension_numbers<[1], [0], [0], [1], [0, 0, 1, 1], [], []>} : vector<512x36xf32>, vector<36x4xf32>, vector<512x4xf32> -> vector<512x4xf32>
    %c0_3 = arith.constant 0 : index
    %c0_4 = arith.constant 0 : index
    %3 = vector.load %arg3[%c0_3, %c0_4] : memref<1x4xf32, #tpu.memory_space<vmem>>, vector<1x4xf32>
    %4 = vector.broadcast %3 : vector<1x4xf32> to vector<512x4xf32>
    %5 = arith.addf %2, %4 : vector<512x4xf32>
    %cst_5 = arith.constant 1.000000e+00 : f32
    %6 = vector.broadcast %cst_5 : f32 to vector<512x4xf32>
    %7 = arith.mulf %5, %6 : vector<512x4xf32>
    %c0_6 = arith.constant 0 : index
    %c0_7 = arith.constant 0 : index
    %8 = vector.load %arg4[%c0_6, %c0_7] : memref<512x4xf32, #tpu.memory_space<vmem>>, vector<512x4xf32>
    %9 = arith.addf %7, %8 : vector<512x4xf32>
    %c0_8 = arith.constant 0 : index
    %c0_9 = arith.constant 0 : index
    %10 = vector.load %arg5[%c0_8, %c0_9] : memref<512x4xf32, #tpu.memory_space<vmem>>, vector<512x4xf32>
    tpu.vector_store %arg5[%c0_8, %c0_9], %9 {strides = array<i32>} : memref<512x4xf32, #tpu.memory_space<vmem>>, vector<512x4xf32>,
    %11 = arith.mulf %9, %9 : vector<512x4xf32>
    %12 = vector.shape_cast %11 : vector<512x4xf32> to vector<1x512x4xf32>
    %cst_10 = arith.constant dense<0.000000e+00> : vector<1xf32>
    %13 = vector.multi_reduction <add>, %12, %cst_10 [1, 2] : vector<1x512x4xf32> to vector<1xf32>
    %14 = vector.shape_cast %13 : vector<1xf32> to vector<1x1x1xf32>
    %15 = vector.extract %14[0, 0, 0] : f32 from vector<1x1x1xf32>
    %16 = vector.broadcast %15 : f32 to vector<1x1x1xf32>
    %c0_11 = arith.constant 0 : index
    %c0_12 = arith.constant 0 : index
    %c0_13 = arith.constant 0 : index
    %17 = vector.load %arg6[%c0_11, %c0_12, %c0_13] : memref<1x1x1xf32, #tpu.memory_space<vmem>>, vector<1x1x1xf32>
    tpu.vector_store %arg6[%c0_11, %c0_12, %c0_13], %16 {strides = array<i32>} : memref<1x1x1xf32, #tpu.memory_space<vmem>>, vector<1x1x1xf32>,
    return
  }
  func.func @transform_0(%arg0: i32) -> (i32, i32) {
    %c0_i32 = arith.constant 0 : i32
    %c0_i32_0 = arith.constant 0 : i32
    return %arg0, %c0_i32 : i32, i32
  }
  func.func @transform_1(%arg0: i32) -> (i32, i32) {
    %c0_i32 = arith.constant 0 : i32
    %c0_i32_0 = arith.constant 0 : i32
    %c0_i32_1 = arith.constant 0 : i32
    return %c0_i32, %c0_i32_0 : i32, i32
  }
  func.func @transform_2(%arg0: i32) -> (i32, i32) {
    %c0_i32 = arith.constant 0 : i32
    %c0_i32_0 = arith.constant 0 : i32
    %c0_i32_1 = arith.constant 0 : i32
    return %c0_i32, %c0_i32_0 : i32, i32
  }
  func.func @transform_3(%arg0: i32) -> (i32, i32) {
    %c0_i32 = arith.constant 0 : i32
    %c0_i32_0 = arith.constant 0 : i32
    return %arg0, %c0_i32 : i32, i32
  }
  func.func @transform_4(%arg0: i32) -> (i32, i32) {
    %c0_i32 = arith.constant 0 : i32
    %c0_i32_0 = arith.constant 0 : i32
    return %arg0, %c0_i32 : i32, i32
  }
  func.func @transform_5(%arg0: i32) -> (i32, i32, i32) {
    %c0_i32 = arith.constant 0 : i32
    %c0_i32_0 = arith.constant 0 : i32
    %c0_i32_1 = arith.constant 0 : i32
    return %arg0, %c0_i32, %c0_i32_0 : i32, i32, i32
  }
}

module attributes {stable_mosaic.version = 11 : i64} {
  func.func @_scale_kernel(%arg0: i32, %arg1: memref<1xf32, #tpu.memory_space<smem>>, %arg2: memref<512x4xf32, #tpu.memory_space<vmem>>, %arg3: memref<512x4xf32, #tpu.memory_space<vmem>>) attributes {dimension_semantics = [#tpu.dimension_semantics<parallel>], iteration_bounds = array<i64: 1>, scalar_prefetch = 0 : i64, scratch_operands = 0 : i64, tpu.core_type = #tpu.core_type<tc>, window_params = [{transform_indices = @transform_0, window_bounds = array<i64: 1>}, {transform_indices = @transform_1, window_bounds = array<i64: 512, 4>}, {transform_indices = @transform_2, window_bounds = array<i64: 512, 4>}]} {
    %c0 = arith.constant 0 : index
    %c0_0 = arith.constant 0 : index
    %0 = vector.load %arg2[%c0, %c0_0] : memref<512x4xf32, #tpu.memory_space<vmem>>, vector<512x4xf32>
    %c0_1 = arith.constant 0 : index
    %1 = memref.load %arg1[%c0_1] : memref<1xf32, #tpu.memory_space<smem>>
    %2 = vector.broadcast %1 : f32 to vector<512x4xf32>
    %3 = arith.mulf %0, %2 : vector<512x4xf32>
    %c0_2 = arith.constant 0 : index
    %c0_3 = arith.constant 0 : index
    %4 = vector.load %arg3[%c0_2, %c0_3] : memref<512x4xf32, #tpu.memory_space<vmem>>, vector<512x4xf32>
    tpu.vector_store %arg3[%c0_2, %c0_3], %3 {strides = array<i32>} : memref<512x4xf32, #tpu.memory_space<vmem>>, vector<512x4xf32>,
    return
  }
  func.func @transform_0(%arg0: i32) -> i32 {
    %c0_i32 = arith.constant 0 : i32
    %c0_i32_0 = arith.constant 0 : i32
    return %c0_i32 : i32
  }
  func.func @transform_1(%arg0: i32) -> (i32, i32) {
    %c0_i32 = arith.constant 0 : i32
    %c0_i32_0 = arith.constant 0 : i32
    return %arg0, %c0_i32 : i32, i32
  }
  func.func @transform_2(%arg0: i32) -> (i32, i32) {
    %c0_i32 = arith.constant 0 : i32
    %c0_i32_0 = arith.constant 0 : i32
    return %arg0, %c0_i32 : i32, i32
  }
}

</mosaic_0001>

<llo_original>
// kernel: resblock_forward.3
$region0: #{resblock_forward.3}
  #allocation0 [shape = 'u32[]', space=smem, size = 0x4, offset = 0x4, fixed_abs, tag = 'smem constant byte address 0x4 - core index']
  #allocation1 [shape = 'u32[144,128]{1,0:T(1,128)}', space=vmem, size = 0x12000, scoped, tag = 'internal scratch']
  %s0 = inlined_call_operand.vmem [shape: f32[512,36], index: 0, kind: input, shape index: {}]
  %s1 = inlined_call_operand.vmem [shape: f32[36,4], index: 1, kind: input, shape index: {}]
  %s2 = inlined_call_operand.vmem [shape: f32[1,4], index: 2, kind: input, shape index: {}]
  %s3 = inlined_call_operand.vmem [shape: f32[512,4], index: 3, kind: output, shape index: {}]
  %s4 = sld [smem:[#allocation0]]
  $region22: #{resblock_forward.3} parent=0
    _
  %s6 = ssub.s32 1, %s4
  %s7 = scalar_select 0, %s6, %s4
  // Predicated region
  $region2: #{resblock_forward.3} parent=0 // pred_check
    _
  $region3: #{resblock_forward.3} parent=0 // pred_check_branch
    %9 = sbr.rel (0) target = $region5
  $region4: #{resblock_forward.3} parent=0 // pred_region
    _
  $region5: #{resblock_forward.3} parent=0 // pred_fallthru
    _
  // Predicated region
  $region6: #{resblock_forward.3} parent=0 // pred_check
    _
  $region7: #{resblock_forward.3} parent=0 // pred_check_branch
    %11 = sbr.rel (0) target = $region9
  $region8: #{resblock_forward.3} parent=0 // pred_region
    _
  $region9: #{resblock_forward.3} parent=0 // pred_fallthru
    _
  // Predicated region
  $region10: #{resblock_forward.3} parent=0 // pred_check
    _
  $region11: #{resblock_forward.3} parent=0 // pred_check_branch
    %13 = sbr.rel (0) target = $region13
  $region12: #{resblock_forward.3} parent=0 // pred_region
    _
  $region13: #{resblock_forward.3} parent=0 // pred_fallthru
    _
  %v14 = vld [vmem:[%s0] sm:$0xff]
  %v15 = vld [vmem:[%s0 + $0x8] sm:$0xff]
  %v16 = vld [vmem:[%s0 + $0x10] sm:$0xff]
  %v17 = vld [vmem:[%s0 + $0x18] sm:$0xff]
  %v18 = vld [vmem:[%s0 + $0x20] sm:$0xff]
  %v19 = vld [vmem:[%s0 + $0x28] sm:$0xff]
  %v20 = vld [vmem:[%s0 + $0x30] sm:$0xff]
  %v21 = vld [vmem:[%s0 + $0x38] sm:$0xff]
  %v22 = vld [vmem:[%s0 + $0x40] sm:$0xff]
  %v23 = vld [vmem:[%s0 + $0x48] sm:$0xff]
  %v24 = vld [vmem:[%s0 + $0x50] sm:$0xff]
  %v25 = vld [vmem:[%s0 + $0x58] sm:$0xff]
  %v26 = vld [vmem:[%s0 + $0x60] sm:$0xff]
  %v27 = vld [vmem:[%s0 + $0x68] sm:$0xff]
  %v28 = vld [vmem:[%s0 + $0x70] sm:$0xff]
  %v29 = vld [vmem:[%s0 + $0x78] sm:$0xff]
  %v30 = vld [vmem:[%s0 + $0x80] sm:$0xff]
  %v31 = vld [vmem:[%s0 + $0x88] sm:$0xff]
  %v32 = vld [vmem:[%s0 + $0x90] sm:$0xff]
  %v33 = vld [vmem:[%s0 + $0x98] sm:$0xff]
  %v34 = vld [vmem:[%s0 + $0xa0] sm:$0xff]
  %v35 = vld [vmem:[%s0 + $0xa8] sm:$0xff]
  %v36 = vld [vmem:[%s0 + $0xb0] sm:$0xff]
  %v37 = vld [vmem:[%s0 + $0xb8] sm:$0xff]
  %v38 = vld [vmem:[%s0 + $0xc0] sm:$0xff]
  %v39 = vld [vmem:[%s0 + $0xc8] sm:$0xff]
  %v40 = vld [vmem:[%s0 + $0xd0] sm:$0xff]
  %v41 = vld [vmem:[%s0 + $0xd8] sm:$0xff]
  %v42 = vld [vmem:[%s0 + $0xe0] sm:$0xff]
  %v43 = vld [vmem:[%s0 + $0xe8] sm:$0xff]
  %v44 = vld [vmem:[%s0 + $0xf0] sm:$0xff]
  %v45 = vld [vmem:[%s0 + $0xf8] sm:$0xff]
  %v46 = vld [vmem:[%s0 + $0x100] sm:$0xff]
  %v47 = vld [vmem:[%s0 + $0x108] sm:$0xff]
  %v48 = vld [vmem:[%s0 + $0x110] sm:$0xff]
  %v49 = vld [vmem:[%s0 + $0x118] sm:$0xff]
  %v50 = vld [vmem:[%s0 + $0x120] sm:$0xff]
  %v51 = vld [vmem:[%s0 + $0x128] sm:$0xff]
  %v52 = vld [vmem:[%s0 + $0x130] sm:$0xff]
  %v53 = vld [vmem:[%s0 + $0x138] sm:$0xff]
  %v54 = vld [vmem:[%s0 + $0x140] sm:$0xff]
  %v55 = vld [vmem:[%s0 + $0x148] sm:$0xff]
  %v56 = vld [vmem:[%s0 + $0x150] sm:$0xff]
  %v57 = vld [vmem:[%s0 + $0x158] sm:$0xff]
  %v58 = vld [vmem:[%s0 + $0x160] sm:$0xff]
  %v59 = vld [vmem:[%s0 + $0x168] sm:$0xff]
  %v60 = vld [vmem:[%s0 + $0x170] sm:$0xff]
  %v61 = vld [vmem:[%s0 + $0x178] sm:$0xff]
  %v62 = vld [vmem:[%s0 + $0x180] sm:$0xff]
  %v63 = vld [vmem:[%s0 + $0x188] sm:$0xff]
  %v64 = vld [vmem:[%s0 + $0x190] sm:$0xff]
  %v65 = vld [vmem:[%s0 + $0x198] sm:$0xff]
  %v66 = vld [vmem:[%s0 + $0x1a0] sm:$0xff]
  %v67 = vld [vmem:[%s0 + $0x1a8] sm:$0xff]
  %v68 = vld [vmem:[%s0 + $0x1b0] sm:$0xff]
  %v69 = vld [vmem:[%s0 + $0x1b8] sm:$0xff]
  %v70 = vld [vmem:[%s0 + $0x1c0] sm:$0xff]
  %v71 = vld [vmem:[%s0 + $0x1c8] sm:$0xff]
  %v72 = vld [vmem:[%s0 + $0x1d0] sm:$0xff]
  %v73 = vld [vmem:[%s0 + $0x1d8] sm:$0xff]
  %v74 = vld [vmem:[%s0 + $0x1e0] sm:$0xff]
  %v75 = vld [vmem:[%s0 + $0x1e8] sm:$0xff]
  %v76 = vld [vmem:[%s0 + $0x1f0] sm:$0xff]
  %v77 = vld [vmem:[%s0 + $0x1f8] sm:$0xff]
  %v78 = vld [vmem:[%s1] sm:$0xff]
  %v79 = vld [vmem:[%s1 + $0x8] sm:$0xff]
  %v80 = vld [vmem:[%s1 + $0x10] sm:$0xff]
  %v81 = vld [vmem:[%s1 + $0x18] sm:$0xff]
  %v82 = vld [vmem:[%s1 + $0x20] sm:$0xf]
  %v83 = vld [vmem:[%s2] sm:$0x1]
  %v85 = vlaneseq
  %v86 = vshrl.u32 %v85, 7
  %v87 = vsub.s32 0, %v86
  %v88 = vrot.slane %v83, %v87
  %vm90 = vcmask 293888
  %v92 = vsel %vm90, %v14, 0
  %v95 = vsel %vm90, %v15, 0
  %v98 = vsel %vm90, %v16, 0
  %v101 = vsel %vm90, %v17, 0
  %v104 = vsel %vm90, %v18, 0
  %v107 = vsel %vm90, %v19, 0
  %v110 = vsel %vm90, %v20, 0
  %v113 = vsel %vm90, %v21, 0
  %v116 = vsel %vm90, %v22, 0
  %v119 = vsel %vm90, %v23, 0
  %v122 = vsel %vm90, %v24, 0
  %v125 = vsel %vm90, %v25, 0
  %v128 = vsel %vm90, %v26, 0
  %v131 = vsel %vm90, %v27, 0
  %v134 = vsel %vm90, %v28, 0
  %v137 = vsel %vm90, %v29, 0
  %v140 = vsel %vm90, %v30, 0
  %v143 = vsel %vm90, %v31, 0
  %v146 = vsel %vm90, %v32, 0
  %v149 = vsel %vm90, %v33, 0
  %v152 = vsel %vm90, %v34, 0
  %v155 = vsel %vm90, %v35, 0
  %v158 = vsel %vm90, %v36, 0
  %v161 = vsel %vm90, %v37, 0
  %v164 = vsel %vm90, %v38, 0
  %v167 = vsel %vm90, %v39, 0
  %v170 = vsel %vm90, %v40, 0
  %v173 = vsel %vm90, %v41, 0
  %v176 = vsel %vm90, %v42, 0
  %v179 = vsel %vm90, %v43, 0
  %v182 = vsel %vm90, %v44, 0
  %v185 = vsel %vm90, %v45, 0
  %v188 = vsel %vm90, %v46, 0
  %v191 = vsel %vm90, %v47, 0
  %v194 = vsel %vm90, %v48, 0
  %v197 = vsel %vm90, %v49, 0
  %v200 = vsel %vm90, %v50, 0
  %v203 = vsel %vm90, %v51, 0
  %v206 = vsel %vm90, %v52, 0
  %v209 = vsel %vm90, %v53, 0
  %v212 = vsel %vm90, %v54, 0
  %v215 = vsel %vm90, %v55, 0
  %v218 = vsel %vm90, %v56, 0
  %v221 = vsel %vm90, %v57, 0
  %v224 = vsel %vm90, %v58, 0
  %v227 = vsel %vm90, %v59, 0
  %v230 = vsel %vm90, %v60, 0
  %v233 = vsel %vm90, %v61, 0
  %v236 = vsel %vm90, %v62, 0
  %v239 = vsel %vm90, %v63, 0
  %v242 = vsel %vm90, %v64, 0
  %v245 = vsel %vm90, %v65, 0
  %v248 = vsel %vm90, %v66, 0
  %v251 = vsel %vm90, %v67, 0
  %v254 = vsel %vm90, %v68, 0
  %v257 = vsel %vm90, %v69, 0
  %v260 = vsel %vm90, %v70, 0
  %v263 = vsel %vm90, %v71, 0
  %v266 = vsel %vm90, %v72, 0
  %v269 = vsel %vm90, %v73, 0
  %v272 = vsel %vm90, %v74, 0
  %v275 = vsel %vm90, %v75, 0
  %v278 = vsel %vm90, %v76, 0
  %v281 = vsel %vm90, %v77, 0
  %vm283 = vcmask 1043456
  %v285 = vsel %vm283, %v82, 0
  %287 = vmatprep.subr.mxu0 0.0
  %288 = vmatpush1.msra.mxu0 0.0
  %289 = vmatprep.subr.mxu0 0.0
  %290 = vmatpush1.msra.mxu0 0.0
  %291 = vmatprep.subr.mxu0 0.0
  %292 = vmatpush1.msra.mxu0 0.0
  %293 = vmatprep.subr.mxu0 0.0
  %294 = vmatpush1.msra.mxu0 0.0
  %295 = vmatprep.subr.mxu0 0.0
  %296 = vmatpush1.msra.mxu0 0.0
  %297 = vmatprep.subr.mxu0 0.0
  %298 = vmatpush1.msra.mxu0 0.0
  %299 = vmatprep.subr.mxu0 0.0
  %300 = vmatpush1.msra.mxu0 0.0
  %301 = vmatprep.subr.mxu0 0.0
  %302 = vmatpush1.msra.mxu0 0.0
  %303 = vmatprep.subr.mxu0 0.0
  %304 = vmatpush1.msra.mxu0 0.0
  %305 = vmatprep.subr.mxu0 0.0
  %306 = vmatpush1.msra.mxu0 0.0
  %307 = vmatprep.subr.mxu0 0.0
  %308 = vmatpush1.msra.mxu0 0.0
  %309 = vmatprep.subr.mxu0 0.0
  %310 = vmatpush1.msra.mxu0 %v285
  %311 = vmatprep.subr.mxu0 0.0
  %312 = vmatpush1.msra.mxu0 %v81
  %313 = vmatprep.subr.mxu0 0.0
  %314 = vmatpush1.msra.mxu0 %v80
  %315 = vmatprep.subr.mxu0 0.0
  %316 = vmatpush1.msra.mxu0 %v79
  %317 = vmatprep.subr.mxu0 0.0
  %318 = vmatpush1.msra.mxu0 %v78
  %319 = vmatprep.subr.mxu0 0.0
  %320 = vmatpush2.msra.mxu0 0.0
  %321 = vmatprep.subr.mxu0 0.0
  %322 = vmatpush2.msra.mxu0 0.0
  %323 = vmatprep.subr.mxu0 0.0
  %324 = vmatpush2.msra.mxu0 0.0
  %325 = vmatprep.subr.mxu0 0.0
  %326 = vmatpush2.msra.mxu0 0.0
  %327 = vmatprep.subr.mxu0 0.0
  %328 = vmatpush2.msra.mxu0 0.0
  %329 = vmatprep.subr.mxu0 0.0
  %330 = vmatpush2.msra.mxu0 0.0
  %331 = vmatprep.subr.mxu0 0.0
  %332 = vmatpush2.msra.mxu0 0.0
  %333 = vmatprep.subr.mxu0 0.0
  %334 = vmatpush2.msra.mxu0 0.0
  %335 = vmatprep.subr.mxu0 0.0
  %336 = vmatpush2.msra.mxu0 0.0
  %337 = vmatprep.subr.mxu0 0.0
  %338 = vmatpush2.msra.mxu0 0.0
  %339 = vmatprep.subr.mxu0 0.0
  %340 = vmatpush2.msra.mxu0 0.0
  %341 = vmatprep.subr.mxu0 0.0
  %342 = vmatpush2.msra.mxu0 0.0
  %343 = vmatprep.subr.mxu0 0.0
  %344 = vmatpush2.msra.mxu0 0.0
  %345 = vmatprep.subr.mxu0 0.0
  %346 = vmatpush2.msra.mxu0 0.0
  %347 = vmatprep.subr.mxu0 0.0
  %348 = vmatpush2.msra.mxu0 0.0
  %349 = vmatprep.subr.mxu0 0.0
  %350 = vmatpush2.msra.mxu0 0.0
  %351 = vmatprep.mubr.f32.mxu0 0.0
  %352 = vmatmul.mubr.f32.gmra.mxu0 %v92
  %v353 = vpop.f32.mrf.mxu0
  %v354 = vadd.f32 %v88, %v353
  %v355 = vpop.f32.mrf.mxu0
  %356 = vmatprep.mubr.f32.mxu0 0.0
  %357 = vmatmul.mubr.f32.gmra.mxu0 %v95
  %v358 = vpop.f32.mrf.mxu0
  %v359 = vadd.f32 %v88, %v358
  %v360 = vpop.f32.mrf.mxu0
  %361 = vmatprep.mubr.f32.mxu0 0.0
  %362 = vmatmul.mubr.f32.gmra.mxu0 %v98
  %v363 = vpop.f32.mrf.mxu0
  %v364 = vadd.f32 %v88, %v363
  %v365 = vpop.f32.mrf.mxu0
  %366 = vmatprep.mubr.f32.mxu0 0.0
  %367 = vmatmul.mubr.f32.gmra.mxu0 %v101
  %v368 = vpop.f32.mrf.mxu0
  %v369 = vadd.f32 %v88, %v368
  %v370 = vpop.f32.mrf.mxu0
  %371 = vmatprep.mubr.f32.mxu0 0.0
  %372 = vmatmul.mubr.f32.gmra.mxu0 %v104
  %v373 = vpop.f32.mrf.mxu0
  %v374 = vadd.f32 %v88, %v373
  %v375 = vpop.f32.mrf.mxu0
  %376 = vmatprep.mubr.f32.mxu0 0.0
  %377 = vmatmul.mubr.f32.gmra.mxu0 %v107
  %v378 = vpop.f32.mrf.mxu0
  %v379 = vadd.f32 %v88, %v378
  %v380 = vpop.f32.mrf.mxu0
  %381 = vmatprep.mubr.f32.mxu0 0.0
  %382 = vmatmul.mubr.f32.gmra.mxu0 %v110
  %v383 = vpop.f32.mrf.mxu0
  %v384 = vadd.f32 %v88, %v383
  %v385 = vpop.f32.mrf.mxu0
  %386 = vmatprep.mubr.f32.mxu0 0.0
  %387 = vmatmul.mubr.f32.gmra.mxu0 %v113
  %v388 = vpop.f32.mrf.mxu0
  %v389 = vadd.f32 %v88, %v388
  %v390 = vpop.f32.mrf.mxu0
  %391 = vmatprep.mubr.f32.mxu0 0.0
  %392 = vmatmul.mubr.f32.gmra.mxu0 %v116
  %v393 = vpop.f32.mrf.mxu0
  %v394 = vadd.f32 %v88, %v393
  %v395 = vpop.f32.mrf.mxu0
  %396 = vmatprep.mubr.f32.mxu0 0.0
  %397 = vmatmul.mubr.f32.gmra.mxu0 %v119
  %v398 = vpop.f32.mrf.mxu0
  %v399 = vadd.f32 %v88, %v398
  %v400 = vpop.f32.mrf.mxu0
  %401 = vmatprep.mubr.f32.mxu0 0.0
  %402 = vmatmul.mubr.f32.gmra.mxu0 %v122
  %v403 = vpop.f32.mrf.mxu0
  %v404 = vadd.f32 %v88, %v403
  %v405 = vpop.f32.mrf.mxu0
  %406 = vmatprep.mubr.f32.mxu0 0.0
  %407 = vmatmul.mubr.f32.gmra.mxu0 %v125
  %v408 = vpop.f32.mrf.mxu0
  %v409 = vadd.f32 %v88, %v408
  %v410 = vpop.f32.mrf.mxu0
  %411 = vmatprep.mubr.f32.mxu0 0.0
  %412 = vmatmul.mubr.f32.gmra.mxu0 %v128
  %v413 = vpop.f32.mrf.mxu0
  %v414 = vadd.f32 %v88, %v413
  %v415 = vpop.f32.mrf.mxu0
  %416 = vmatprep.mubr.f32.mxu0 0.0
  %417 = vmatmul.mubr.f32.gmra.mxu0 %v131
  %v418 = vpop.f32.mrf.mxu0
  %v419 = vadd.f32 %v88, %v418
  %v420 = vpop.f32.mrf.mxu0
  %421 = vmatprep.mubr.f32.mxu0 0.0
  %422 = vmatmul.mubr.f32.gmra.mxu0 %v134
  %v423 = vpop.f32.mrf.mxu0
  %v424 = vadd.f32 %v88, %v423
  %v425 = vpop.f32.mrf.mxu0
  %426 = vmatprep.mubr.f32.mxu0 0.0
  %427 = vmatmul.mubr.f32.gmra.mxu0 %v137
  %v428 = vpop.f32.mrf.mxu0
  %v429 = vadd.f32 %v88, %v428
  %v430 = vpop.f32.mrf.mxu0
  %431 = vmatprep.mubr.f32.mxu0 0.0
  %432 = vmatmul.mubr.f32.gmra.mxu0 %v140
  %v433 = vpop.f32.mrf.mxu0
  %v434 = vadd.f32 %v88, %v433
  %v435 = vpop.f32.mrf.mxu0
  %436 = vmatprep.mubr.f32.mxu0 0.0
  %437 = vmatmul.mubr.f32.gmra.mxu0 %v143
  %v438 = vpop.f32.mrf.mxu0
  %v439 = vadd.f32 %v88, %v438
  %v440 = vpop.f32.mrf.mxu0
  %441 = vmatprep.mubr.f32.mxu0 0.0
  %442 = vmatmul.mubr.f32.gmra.mxu0 %v146
  %v443 = vpop.f32.mrf.mxu0
  %v444 = vadd.f32 %v88, %v443
  %v445 = vpop.f32.mrf.mxu0
  %446 = vmatprep.mubr.f32.mxu0 0.0
  %447 = vmatmul.mubr.f32.gmra.mxu0 %v149
  %v448 = vpop.f32.mrf.mxu0
  %v449 = vadd.f32 %v88, %v448
  %v450 = vpop.f32.mrf.mxu0
  %451 = vmatprep.mubr.f32.mxu0 0.0
  %452 = vmatmul.mubr.f32.gmra.mxu0 %v152
  %v453 = vpop.f32.mrf.mxu0
  %v454 = vadd.f32 %v88, %v453
  %v455 = vpop.f32.mrf.mxu0
  %456 = vmatprep.mubr.f32.mxu0 0.0
  %457 = vmatmul.mubr.f32.gmra.mxu0 %v155
  %v458 = vpop.f32.mrf.mxu0
  %v459 = vadd.f32 %v88, %v458
  %v460 = vpop.f32.mrf.mxu0
  %461 = vmatprep.mubr.f32.mxu0 0.0
  %462 = vmatmul.mubr.f32.gmra.mxu0 %v158
  %v463 = vpop.f32.mrf.mxu0
  %v464 = vadd.f32 %v88, %v463
  %v465 = vpop.f32.mrf.mxu0
  %466 = vmatprep.mubr.f32.mxu0 0.0
  %467 = vmatmul.mubr.f32.gmra.mxu0 %v161
  %v468 = vpop.f32.mrf.mxu0
  %v469 = vadd.f32 %v88, %v468
  %v470 = vpop.f32.mrf.mxu0
  %471 = vmatprep.mubr.f32.mxu0 0.0
  %472 = vmatmul.mubr.f32.gmra.mxu0 %v164
  %v473 = vpop.f32.mrf.mxu0
  %v474 = vadd.f32 %v88, %v473
  %v475 = vpop.f32.mrf.mxu0
  %476 = vmatprep.mubr.f32.mxu0 0.0
  %477 = vmatmul.mubr.f32.gmra.mxu0 %v167
  %v478 = vpop.f32.mrf.mxu0
  %v479 = vadd.f32 %v88, %v478
  %v480 = vpop.f32.mrf.mxu0
  %481 = vmatprep.mubr.f32.mxu0 0.0
  %482 = vmatmul.mubr.f32.gmra.mxu0 %v170
  %v483 = vpop.f32.mrf.mxu0
  %v484 = vadd.f32 %v88, %v483
  %v485 = vpop.f32.mrf.mxu0
  %486 = vmatprep.mubr.f32.mxu0 0.0
  %487 = vmatmul.mubr.f32.gmra.mxu0 %v173
  %v488 = vpop.f32.mrf.mxu0
  %v489 = vadd.f32 %v88, %v488
  %v490 = vpop.f32.mrf.mxu0
  %491 = vmatprep.mubr.f32.mxu0 0.0
  %492 = vmatmul.mubr.f32.gmra.mxu0 %v176
  %v493 = vpop.f32.mrf.mxu0
  %v494 = vadd.f32 %v88, %v493
  %v495 = vpop.f32.mrf.mxu0
  %496 = vmatprep.mubr.f32.mxu0 0.0
  %497 = vmatmul.mubr.f32.gmra.mxu0 %v179
  %v498 = vpop.f32.mrf.mxu0
  %v499 = vadd.f32 %v88, %v498
  %v500 = vpop.f32.mrf.mxu0
  %501 = vmatprep.mubr.f32.mxu0 0.0
  %502 = vmatmul.mubr.f32.gmra.mxu0 %v182
  %v503 = vpop.f32.mrf.mxu0
  %v504 = vadd.f32 %v88, %v503
  %v505 = vpop.f32.mrf.mxu0
  %506 = vmatprep.mubr.f32.mxu0 0.0
  %507 = vmatmul.mubr.f32.gmra.mxu0 %v185
  %v508 = vpop.f32.mrf.mxu0
  %v509 = vadd.f32 %v88, %v508
  %v510 = vpop.f32.mrf.mxu0
  %511 = vmatprep.mubr.f32.mxu0 0.0
  %512 = vmatmul.mubr.f32.gmra.mxu0 %v188
  %v513 = vpop.f32.mrf.mxu0
  %v514 = vadd.f32 %v88, %v513
  %v515 = vpop.f32.mrf.mxu0
  %516 = vmatprep.mubr.f32.mxu0 0.0
  %517 = vmatmul.mubr.f32.gmra.mxu0 %v191
  %v518 = vpop.f32.mrf.mxu0
  %v519 = vadd.f32 %v88, %v518
  %v520 = vpop.f32.mrf.mxu0
  %521 = vmatprep.mubr.f32.mxu0 0.0
  %522 = vmatmul.mubr.f32.gmra.mxu0 %v194
  %v523 = vpop.f32.mrf.mxu0
  %v524 = vadd.f32 %v88, %v523
  %v525 = vpop.f32.mrf.mxu0
  %526 = vmatprep.mubr.f32.mxu0 0.0
  %527 = vmatmul.mubr.f32.gmra.mxu0 %v197
  %v528 = vpop.f32.mrf.mxu0
  %v529 = vadd.f32 %v88, %v528
  %v530 = vpop.f32.mrf.mxu0
  %531 = vmatprep.mubr.f32.mxu0 0.0
  %532 = vmatmul.mubr.f32.gmra.mxu0 %v200
  %v533 = vpop.f32.mrf.mxu0
  %v534 = vadd.f32 %v88, %v533
  %v535 = vpop.f32.mrf.mxu0
  %536 = vmatprep.mubr.f32.mxu0 0.0
  %537 = vmatmul.mubr.f32.gmra.mxu0 %v203
  %v538 = vpop.f32.mrf.mxu0
  %v539 = vadd.f32 %v88, %v538
  %v540 = vpop.f32.mrf.mxu0
  %541 = vmatprep.mubr.f32.mxu0 0.0
  %542 = vmatmul.mubr.f32.gmra.mxu0 %v206
  %v543 = vpop.f32.mrf.mxu0
  %v544 = vadd.f32 %v88, %v543
  %v545 = vpop.f32.mrf.mxu0
  %546 = vmatprep.mubr.f32.mxu0 0.0
  %547 = vmatmul.mubr.f32.gmra.mxu0 %v209
  %v548 = vpop.f32.mrf.mxu0
  %v549 = vadd.f32 %v88, %v548
  %v550 = vpop.f32.mrf.mxu0
  %551 = vmatprep.mubr.f32.mxu0 0.0
  %552 = vmatmul.mubr.f32.gmra.mxu0 %v212
  %v553 = vpop.f32.mrf.mxu0
  %v554 = vadd.f32 %v88, %v553
  %v555 = vpop.f32.mrf.mxu0
  %556 = vmatprep.mubr.f32.mxu0 0.0
  %557 = vmatmul.mubr.f32.gmra.mxu0 %v215
  %v558 = vpop.f32.mrf.mxu0
  %v559 = vadd.f32 %v88, %v558
  %v560 = vpop.f32.mrf.mxu0
  %561 = vmatprep.mubr.f32.mxu0 0.0
  %562 = vmatmul.mubr.f32.gmra.mxu0 %v218
  %v563 = vpop.f32.mrf.mxu0
  %v564 = vadd.f32 %v88, %v563
  %v565 = vpop.f32.mrf.mxu0
  %566 = vmatprep.mubr.f32.mxu0 0.0
  %567 = vmatmul.mubr.f32.gmra.mxu0 %v221
  %v568 = vpop.f32.mrf.mxu0
  %v569 = vadd.f32 %v88, %v568
  %v570 = vpop.f32.mrf.mxu0
  %571 = vmatprep.mubr.f32.mxu0 0.0
  %572 = vmatmul.mubr.f32.gmra.mxu0 %v224
  %v573 = vpop.f32.mrf.mxu0
  %v574 = vadd.f32 %v88, %v573
  %v575 = vpop.f32.mrf.mxu0
  %576 = vmatprep.mubr.f32.mxu0 0.0
  %577 = vmatmul.mubr.f32.gmra.mxu0 %v227
  %v578 = vpop.f32.mrf.mxu0
  %v579 = vadd.f32 %v88, %v578
  %v580 = vpop.f32.mrf.mxu0
  %581 = vmatprep.mubr.f32.mxu0 0.0
  %582 = vmatmul.mubr.f32.gmra.mxu0 %v230
  %v583 = vpop.f32.mrf.mxu0
  %v584 = vadd.f32 %v88, %v583
  %v585 = vpop.f32.mrf.mxu0
  %586 = vmatprep.mubr.f32.mxu0 0.0
  %587 = vmatmul.mubr.f32.gmra.mxu0 %v233
  %v588 = vpop.f32.mrf.mxu0
  %v589 = vadd.f32 %v88, %v588
  %v590 = vpop.f32.mrf.mxu0
  %591 = vmatprep.mubr.f32.mxu0 0.0
  %592 = vmatmul.mubr.f32.gmra.mxu0 %v236
  %v593 = vpop.f32.mrf.mxu0
  %v594 = vadd.f32 %v88, %v593
  %v595 = vpop.f32.mrf.mxu0
  %596 = vmatprep.mubr.f32.mxu0 0.0
  %597 = vmatmul.mubr.f32.gmra.mxu0 %v239
  %v598 = vpop.f32.mrf.mxu0
  %v599 = vadd.f32 %v88, %v598
  %v600 = vpop.f32.mrf.mxu0
  %601 = vmatprep.mubr.f32.mxu0 0.0
  %602 = vmatmul.mubr.f32.gmra.mxu0 %v242
  %v603 = vpop.f32.mrf.mxu0
  %v604 = vadd.f32 %v88, %v603
  %v605 = vpop.f32.mrf.mxu0
  %606 = vmatprep.mubr.f32.mxu0 0.0
  %607 = vmatmul.mubr.f32.gmra.mxu0 %v245
  %v608 = vpop.f32.mrf.mxu0
  %v609 = vadd.f32 %v88, %v608
  %v610 = vpop.f32.mrf.mxu0
  %611 = vmatprep.mubr.f32.mxu0 0.0
  %612 = vmatmul.mubr.f32.gmra.mxu0 %v248
  %v613 = vpop.f32.mrf.mxu0
  %v614 = vadd.f32 %v88, %v613
  %v615 = vpop.f32.mrf.mxu0
  %616 = vmatprep.mubr.f32.mxu0 0.0
  %617 = vmatmul.mubr.f32.gmra.mxu0 %v251
  %v618 = vpop.f32.mrf.mxu0
  %v619 = vadd.f32 %v88, %v618
  %v620 = vpop.f32.mrf.mxu0
  %621 = vmatprep.mubr.f32.mxu0 0.0
  %622 = vmatmul.mubr.f32.gmra.mxu0 %v254
  %v623 = vpop.f32.mrf.mxu0
  %v624 = vadd.f32 %v88, %v623
  %v625 = vpop.f32.mrf.mxu0
  %626 = vmatprep.mubr.f32.mxu0 0.0
  %627 = vmatmul.mubr.f32.gmra.mxu0 %v257
  %v628 = vpop.f32.mrf.mxu0
  %v629 = vadd.f32 %v88, %v628
  %v630 = vpop.f32.mrf.mxu0
  %631 = vmatprep.mubr.f32.mxu0 0.0
  %632 = vmatmul.mubr.f32.gmra.mxu0 %v260
  %v633 = vpop.f32.mrf.mxu0
  %v634 = vadd.f32 %v88, %v633
  %v635 = vpop.f32.mrf.mxu0
  %636 = vmatprep.mubr.f32.mxu0 0.0
  %637 = vmatmul.mubr.f32.gmra.mxu0 %v263
  %v638 = vpop.f32.mrf.mxu0
  %v639 = vadd.f32 %v88, %v638
  %v640 = vpop.f32.mrf.mxu0
  %641 = vmatprep.mubr.f32.mxu0 0.0
  %642 = vmatmul.mubr.f32.gmra.mxu0 %v266
  %v643 = vpop.f32.mrf.mxu0
  %v644 = vadd.f32 %v88, %v643
  %v645 = vpop.f32.mrf.mxu0
  %646 = vmatprep.mubr.f32.mxu0 0.0
  %647 = vmatmul.mubr.f32.gmra.mxu0 %v269
  %v648 = vpop.f32.mrf.mxu0
  %v649 = vadd.f32 %v88, %v648
  %v650 = vpop.f32.mrf.mxu0
  %651 = vmatprep.mubr.f32.mxu0 0.0
  %652 = vmatmul.mubr.f32.gmra.mxu0 %v272
  %v653 = vpop.f32.mrf.mxu0
  %v654 = vadd.f32 %v88, %v653
  %v655 = vpop.f32.mrf.mxu0
  %656 = vmatprep.mubr.f32.mxu0 0.0
  %657 = vmatmul.mubr.f32.gmra.mxu0 %v275
  %v658 = vpop.f32.mrf.mxu0
  %v659 = vadd.f32 %v88, %v658
  %v660 = vpop.f32.mrf.mxu0
  %661 = vmatprep.mubr.f32.mxu0 0.0
  %662 = vmatmul.mubr.f32.gmra.mxu0 %v278
  %v663 = vpop.f32.mrf.mxu0
  %v664 = vadd.f32 %v88, %v663
  %v665 = vpop.f32.mrf.mxu0
  %666 = vmatprep.mubr.f32.mxu0 0.0
  %667 = vmatmul.mubr.f32.gmra.mxu0 %v281
  %v668 = vpop.f32.mrf.mxu0
  %v669 = vadd.f32 %v88, %v668
  %v670 = vpop.f32.mrf.mxu0
  %671 = vdwg.mxu0
  %v672 = vmax.f32 %v354, 0.0
  %v673 = vmax.f32 %v359, 0.0
  %v674 = vmax.f32 %v364, 0.0
  %v675 = vmax.f32 %v369, 0.0
  %v676 = vmax.f32 %v374, 0.0
  %v677 = vmax.f32 %v379, 0.0
  %v678 = vmax.f32 %v384, 0.0
  %v679 = vmax.f32 %v389, 0.0
  %v680 = vmax.f32 %v394, 0.0
  %v681 = vmax.f32 %v399, 0.0
  %v682 = vmax.f32 %v404, 0.0
  %v683 = vmax.f32 %v409, 0.0
  %v684 = vmax.f32 %v414, 0.0
  %v685 = vmax.f32 %v419, 0.0
  %v686 = vmax.f32 %v424, 0.0
  %v687 = vmax.f32 %v429, 0.0
  %v688 = vmax.f32 %v434, 0.0
  %v689 = vmax.f32 %v439, 0.0
  %v690 = vmax.f32 %v444, 0.0
  %v691 = vmax.f32 %v449, 0.0
  %v692 = vmax.f32 %v454, 0.0
  %v693 = vmax.f32 %v459, 0.0
  %v694 = vmax.f32 %v464, 0.0
  %v695 = vmax.f32 %v469, 0.0
  %v696 = vmax.f32 %v474, 0.0
  %v697 = vmax.f32 %v479, 0.0
  %v698 = vmax.f32 %v484, 0.0
  %v699 = vmax.f32 %v489, 0.0
  %v700 = vmax.f32 %v494, 0.0
  %v701 = vmax.f32 %v499, 0.0
  %v702 = vmax.f32 %v504, 0.0
  %v703 = vmax.f32 %v509, 0.0
  %v704 = vmax.f32 %v514, 0.0
  %v705 = vmax.f32 %v519, 0.0
  %v706 = vmax.f32 %v524, 0.0
  %v707 = vmax.f32 %v529, 0.0
  %v708 = vmax.f32 %v534, 0.0
  %v709 = vmax.f32 %v539, 0.0
  %v710 = vmax.f32 %v544, 0.0
  %v711 = vmax.f32 %v549, 0.0
  %v712 = vmax.f32 %v554, 0.0
  %v713 = vmax.f32 %v559, 0.0
  %v714 = vmax.f32 %v564, 0.0
  %v715 = vmax.f32 %v569, 0.0
  %v716 = vmax.f32 %v574, 0.0
  %v717 = vmax.f32 %v579, 0.0
  %v718 = vmax.f32 %v584, 0.0
  %v719 = vmax.f32 %v589, 0.0
  %v720 = vmax.f32 %v594, 0.0
  %v721 = vmax.f32 %v599, 0.0
  %v722 = vmax.f32 %v604, 0.0
  %v723 = vmax.f32 %v609, 0.0
  %v724 = vmax.f32 %v614, 0.0
  %v725 = vmax.f32 %v619, 0.0
  %v726 = vmax.f32 %v624, 0.0
  %v727 = vmax.f32 %v629, 0.0
  %v728 = vmax.f32 %v634, 0.0
  %v729 = vmax.f32 %v639, 0.0
  %v730 = vmax.f32 %v644, 0.0
  %v731 = vmax.f32 %v649, 0.0
  %v732 = vmax.f32 %v654, 0.0
  %v733 = vmax.f32 %v659, 0.0
  %v734 = vmax.f32 %v664, 0.0
  %v735 = vmax.f32 %v669, 0.0
  %vm736 = vcmask 31744
  %737 = vst.msk [vmem:[%s3] sm:$0xff] %vm736, %v672
  %738 = vst.msk [vmem:[%s3 + $0x8] sm:$0xff] %vm736, %v673
  %739 = vst.msk [vmem:[%s3 + $0x10] sm:$0xff] %vm736, %v674
  %740 = vst.msk [vmem:[%s3 + $0x18] sm:$0xff] %vm736, %v675
  %741 = vst.msk [vmem:[%s3 + $0x20] sm:$0xff] %vm736, %v676
  %742 = vst.msk [vmem:[%s3 + $0x28] sm:$0xff] %vm736, %v677
  %743 = vst.msk [vmem:[%s3 + $0x30] sm:$0xff] %vm736, %v678
  %744 = vst.msk [vmem:[%s3 + $0x38] sm:$0xff] %vm736, %v679
  %745 = vst.msk [vmem:[%s3 + $0x40] sm:$0xff] %vm736, %v680
  %746 = vst.msk [vmem:[%s3 + $0x48] sm:$0xff] %vm736, %v681
  %747 = vst.msk [vmem:[%s3 + $0x50] sm:$0xff] %vm736, %v682
  %748 = vst.msk [vmem:[%s3 + $0x58] sm:$0xff] %vm736, %v683
  %749 = vst.msk [vmem:[%s3 + $0x60] sm:$0xff] %vm736, %v684
  %750 = vst.msk [vmem:[%s3 + $0x68] sm:$0xff] %vm736, %v685
  %751 = vst.msk [vmem:[%s3 + $0x70] sm:$0xff] %vm736, %v686
  %752 = vst.msk [vmem:[%s3 + $0x78] sm:$0xff] %vm736, %v687
  %753 = vst.msk [vmem:[%s3 + $0x80] sm:$0xff] %vm736, %v688
  %754 = vst.msk [vmem:[%s3 + $0x88] sm:$0xff] %vm736, %v689
  %755 = vst.msk [vmem:[%s3 + $0x90] sm:$0xff] %vm736, %v690
  %756 = vst.msk [vmem:[%s3 + $0x98] sm:$0xff] %vm736, %v691
  %757 = vst.msk [vmem:[%s3 + $0xa0] sm:$0xff] %vm736, %v692
  %758 = vst.msk [vmem:[%s3 + $0xa8] sm:$0xff] %vm736, %v693
  %759 = vst.msk [vmem:[%s3 + $0xb0] sm:$0xff] %vm736, %v694
  %760 = vst.msk [vmem:[%s3 + $0xb8] sm:$0xff] %vm736, %v695
  %761 = vst.msk [vmem:[%s3 + $0xc0] sm:$0xff] %vm736, %v696
  %762 = vst.msk [vmem:[%s3 + $0xc8] sm:$0xff] %vm736, %v697
  %763 = vst.msk [vmem:[%s3 + $0xd0] sm:$0xff] %vm736, %v698
  %764 = vst.msk [vmem:[%s3 + $0xd8] sm:$0xff] %vm736, %v699
  %765 = vst.msk [vmem:[%s3 + $0xe0] sm:$0xff] %vm736, %v700
  %766 = vst.msk [vmem:[%s3 + $0xe8] sm:$0xff] %vm736, %v701
  %767 = vst.msk [vmem:[%s3 + $0xf0] sm:$0xff] %vm736, %v702
  %768 = vst.msk [vmem:[%s3 + $0xf8] sm:$0xff] %vm736, %v703
  %769 = vst.msk [vmem:[%s3 + $0x100] sm:$0xff] %vm736, %v704
  %770 = vst.msk [vmem:[%s3 + $0x108] sm:$0xff] %vm736, %v705
  %771 = vst.msk [vmem:[%s3 + $0x110] sm:$0xff] %vm736, %v706
  %772 = vst.msk [vmem:[%s3 + $0x118] sm:$0xff] %vm736, %v707
  %773 = vst.msk [vmem:[%s3 + $0x120] sm:$0xff] %vm736, %v708
  %774 = vst.msk [vmem:[%s3 + $0x128] sm:$0xff] %vm736, %v709
  %775 = vst.msk [vmem:[%s3 + $0x130] sm:$0xff] %vm736, %v710
  %776 = vst.msk [vmem:[%s3 + $0x138] sm:$0xff] %vm736, %v711
  %777 = vst.msk [vmem:[%s3 + $0x140] sm:$0xff] %vm736, %v712
  %778 = vst.msk [vmem:[%s3 + $0x148] sm:$0xff] %vm736, %v713
  %779 = vst.msk [vmem:[%s3 + $0x150] sm:$0xff] %vm736, %v714
  %780 = vst.msk [vmem:[%s3 + $0x158] sm:$0xff] %vm736, %v715
  %781 = vst.msk [vmem:[%s3 + $0x160] sm:$0xff] %vm736, %v716
  %782 = vst.msk [vmem:[%s3 + $0x168] sm:$0xff] %vm736, %v717
  %783 = vst.msk [vmem:[%s3 + $0x170] sm:$0xff] %vm736, %v718
  %784 = vst.msk [vmem:[%s3 + $0x178] sm:$0xff] %vm736, %v719
  %785 = vst.msk [vmem:[%s3 + $0x180] sm:$0xff] %vm736, %v720
  %786 = vst.msk [vmem:[%s3 + $0x188] sm:$0xff] %vm736, %v721
  %787 = vst.msk [vmem:[%s3 + $0x190] sm:$0xff] %vm736, %v722
  %788 = vst.msk [vmem:[%s3 + $0x198] sm:$0xff] %vm736, %v723
  %789 = vst.msk [vmem:[%s3 + $0x1a0] sm:$0xff] %vm736, %v724
  %790 = vst.msk [vmem:[%s3 + $0x1a8] sm:$0xff] %vm736, %v725
  %791 = vst.msk [vmem:[%s3 + $0x1b0] sm:$0xff] %vm736, %v726
  %792 = vst.msk [vmem:[%s3 + $0x1b8] sm:$0xff] %vm736, %v727
  %793 = vst.msk [vmem:[%s3 + $0x1c0] sm:$0xff] %vm736, %v728
  %794 = vst.msk [vmem:[%s3 + $0x1c8] sm:$0xff] %vm736, %v729
  %795 = vst.msk [vmem:[%s3 + $0x1d0] sm:$0xff] %vm736, %v730
  %796 = vst.msk [vmem:[%s3 + $0x1d8] sm:$0xff] %vm736, %v731
  %797 = vst.msk [vmem:[%s3 + $0x1e0] sm:$0xff] %vm736, %v732
  %798 = vst.msk [vmem:[%s3 + $0x1e8] sm:$0xff] %vm736, %v733
  %799 = vst.msk [vmem:[%s3 + $0x1f0] sm:$0xff] %vm736, %v734
  %800 = vst.msk [vmem:[%s3 + $0x1f8] sm:$0xff] %vm736, %v735
  // Predicated region
  $region14: #{resblock_forward.3} parent=0 // pred_check
    _
  $region15: #{resblock_forward.3} parent=0 // pred_check_branch
    %802 = sbr.rel (0) target = $region17
  $region16: #{resblock_forward.3} parent=0 // pred_region
    _
  $region17: #{resblock_forward.3} parent=0 // pred_fallthru
    _
  // Predicated region
  $region18: #{resblock_forward.3} parent=0 // pred_check
    _
  $region19: #{resblock_forward.3} parent=0 // pred_check_branch
    %804 = sbr.rel (0) target = $region21
  $region20: #{resblock_forward.3} parent=0 // pred_region
    _
  $region21: #{resblock_forward.3} parent=0 // pred_fallthru
    _

// kernel: resblock_forward.5
$region0: #{resblock_forward.5}
  #allocation0 [shape = 'u32[]', space=smem, size = 0x4, offset = 0x4, fixed_abs, tag = 'smem constant byte address 0x4 - core index']
  #allocation1 [shape = 'u32[144,128]{1,0:T(1,128)}', space=vmem, size = 0x12000, scoped, tag = 'internal scratch']
  #allocation2 [shape = 'f32[1]{0:T(128)S(6)}', space=smem, size = 0x200, scoped, tag = 'scoped memory for resblock_forward.5']
  %s0 = inlined_call_operand.<no memory space> [shape: f32[1], index: 0, kind: input, shape index: {}]
  %s1 = inlined_call_operand.vmem [shape: f32[512,4], index: 1, kind: input, shape index: {}]
  %s2 = inlined_call_operand.vmem [shape: f32[512,4], index: 2, kind: output, shape index: {}]
  %s3 = sld [smem:[#allocation0]]
  $region18: #{resblock_forward.5} parent=0
    _
  %s5 = ssub.s32 1, %s3
  %s6 = scalar_select 0, %s5, %s3
  %7 = sst [smem:[#allocation2]] %s0
  // Predicated region
  $region2: #{resblock_forward.5} parent=0 // pred_check
    _
  $region3: #{resblock_forward.5} parent=0 // pred_check_branch
    %9 = sbr.rel (0) target = $region5
  $region4: #{resblock_forward.5} parent=0 // pred_region
    _
  $region5: #{resblock_forward.5} parent=0 // pred_fallthru
    _
  // Predicated region
  $region6: #{resblock_forward.5} parent=0 // pred_check
    _
  $region7: #{resblock_forward.5} parent=0 // pred_check_branch
    %11 = sbr.rel (0) target = $region9
  $region8: #{resblock_forward.5} parent=0 // pred_region
    _
  $region9: #{resblock_forward.5} parent=0 // pred_fallthru
    _
  %v12 = vld [vmem:[%s1] sm:$0xff]
  %v13 = vld [vmem:[%s1 + $0x8] sm:$0xff]
  %v14 = vld [vmem:[%s1 + $0x10] sm:$0xff]
  %v15 = vld [vmem:[%s1 + $0x18] sm:$0xff]
  %v16 = vld [vmem:[%s1 + $0x20] sm:$0xff]
  %v17 = vld [vmem:[%s1 + $0x28] sm:$0xff]
  %v18 = vld [vmem:[%s1 + $0x30] sm:$0xff]
  %v19 = vld [vmem:[%s1 + $0x38] sm:$0xff]
  %v20 = vld [vmem:[%s1 + $0x40] sm:$0xff]
  %v21 = vld [vmem:[%s1 + $0x48] sm:$0xff]
  %v22 = vld [vmem:[%s1 + $0x50] sm:$0xff]
  %v23 = vld [vmem:[%s1 + $0x58] sm:$0xff]
  %v24 = vld [vmem:[%s1 + $0x60] sm:$0xff]
  %v25 = vld [vmem:[%s1 + $0x68] sm:$0xff]
  %v26 = vld [vmem:[%s1 + $0x70] sm:$0xff]
  %v27 = vld [vmem:[%s1 + $0x78] sm:$0xff]
  %v28 = vld [vmem:[%s1 + $0x80] sm:$0xff]
  %v29 = vld [vmem:[%s1 + $0x88] sm:$0xff]
  %v30 = vld [vmem:[%s1 + $0x90] sm:$0xff]
  %v31 = vld [vmem:[%s1 + $0x98] sm:$0xff]
  %v32 = vld [vmem:[%s1 + $0xa0] sm:$0xff]
  %v33 = vld [vmem:[%s1 + $0xa8] sm:$0xff]
  %v34 = vld [vmem:[%s1 + $0xb0] sm:$0xff]
  %v35 = vld [vmem:[%s1 + $0xb8] sm:$0xff]
  %v36 = vld [vmem:[%s1 + $0xc0] sm:$0xff]
  %v37 = vld [vmem:[%s1 + $0xc8] sm:$0xff]
  %v38 = vld [vmem:[%s1 + $0xd0] sm:$0xff]
  %v39 = vld [vmem:[%s1 + $0xd8] sm:$0xff]
  %v40 = vld [vmem:[%s1 + $0xe0] sm:$0xff]
  %v41 = vld [vmem:[%s1 + $0xe8] sm:$0xff]
  %v42 = vld [vmem:[%s1 + $0xf0] sm:$0xff]
  %v43 = vld [vmem:[%s1 + $0xf8] sm:$0xff]
  %v44 = vld [vmem:[%s1 + $0x100] sm:$0xff]
  %v45 = vld [vmem:[%s1 + $0x108] sm:$0xff]
  %v46 = vld [vmem:[%s1 + $0x110] sm:$0xff]
  %v47 = vld [vmem:[%s1 + $0x118] sm:$0xff]
  %v48 = vld [vmem:[%s1 + $0x120] sm:$0xff]
  %v49 = vld [vmem:[%s1 + $0x128] sm:$0xff]
  %v50 = vld [vmem:[%s1 + $0x130] sm:$0xff]
  %v51 = vld [vmem:[%s1 + $0x138] sm:$0xff]
  %v52 = vld [vmem:[%s1 + $0x140] sm:$0xff]
  %v53 = vld [vmem:[%s1 + $0x148] sm:$0xff]
  %v54 = vld [vmem:[%s1 + $0x150] sm:$0xff]
  %v55 = vld [vmem:[%s1 + $0x158] sm:$0xff]
  %v56 = vld [vmem:[%s1 + $0x160] sm:$0xff]
  %v57 = vld [vmem:[%s1 + $0x168] sm:$0xff]
  %v58 = vld [vmem:[%s1 + $0x170] sm:$0xff]
  %v59 = vld [vmem:[%s1 + $0x178] sm:$0xff]
  %v60 = vld [vmem:[%s1 + $0x180] sm:$0xff]
  %v61 = vld [vmem:[%s1 + $0x188] sm:$0xff]
  %v62 = vld [vmem:[%s1 + $0x190] sm:$0xff]
  %v63 = vld [vmem:[%s1 + $0x198] sm:$0xff]
  %v64 = vld [vmem:[%s1 + $0x1a0] sm:$0xff]
  %v65 = vld [vmem:[%s1 + $0x1a8] sm:$0xff]
  %v66 = vld [vmem:[%s1 + $0x1b0] sm:$0xff]
  %v67 = vld [vmem:[%s1 + $0x1b8] sm:$0xff]
  %v68 = vld [vmem:[%s1 + $0x1c0] sm:$0xff]
  %v69 = vld [vmem:[%s1 + $0x1c8] sm:$0xff]
  %v70 = vld [vmem:[%s1 + $0x1d0] sm:$0xff]
  %v71 = vld [vmem:[%s1 + $0x1d8] sm:$0xff]
  %v72 = vld [vmem:[%s1 + $0x1e0] sm:$0xff]
  %v73 = vld [vmem:[%s1 + $0x1e8] sm:$0xff]
  %v74 = vld [vmem:[%s1 + $0x1f0] sm:$0xff]
  %v75 = vld [vmem:[%s1 + $0x1f8] sm:$0xff]
  %s76 = sld [smem:[#allocation2]]
  %v77 = vstv %s76
  %v78 = vmul.f32 %v12, %v77
  %v79 = vmul.f32 %v13, %v77
  %v80 = vmul.f32 %v14, %v77
  %v81 = vmul.f32 %v15, %v77
  %v82 = vmul.f32 %v16, %v77
  %v83 = vmul.f32 %v17, %v77
  %v84 = vmul.f32 %v18, %v77
  %v85 = vmul.f32 %v19, %v77
  %v86 = vmul.f32 %v20, %v77
  %v87 = vmul.f32 %v21, %v77
  %v88 = vmul.f32 %v22, %v77
  %v89 = vmul.f32 %v23, %v77
  %v90 = vmul.f32 %v24, %v77
  %v91 = vmul.f32 %v25, %v77
  %v92 = vmul.f32 %v26, %v77
  %v93 = vmul.f32 %v27, %v77
  %v94 = vmul.f32 %v28, %v77
  %v95 = vmul.f32 %v29, %v77
  %v96 = vmul.f32 %v30, %v77
  %v97 = vmul.f32 %v31, %v77
  %v98 = vmul.f32 %v32, %v77
  %v99 = vmul.f32 %v33, %v77
  %v100 = vmul.f32 %v34, %v77
  %v101 = vmul.f32 %v35, %v77
  %v102 = vmul.f32 %v36, %v77
  %v103 = vmul.f32 %v37, %v77
  %v104 = vmul.f32 %v38, %v77
  %v105 = vmul.f32 %v39, %v77
  %v106 = vmul.f32 %v40, %v77
  %v107 = vmul.f32 %v41, %v77
  %v108 = vmul.f32 %v42, %v77
  %v109 = vmul.f32 %v43, %v77
  %v110 = vmul.f32 %v44, %v77
  %v111 = vmul.f32 %v45, %v77
  %v112 = vmul.f32 %v46, %v77
  %v113 = vmul.f32 %v47, %v77
  %v114 = vmul.f32 %v48, %v77
  %v115 = vmul.f32 %v49, %v77
  %v116 = vmul.f32 %v50, %v77
  %v117 = vmul.f32 %v51, %v77
  %v118 = vmul.f32 %v52, %v77
  %v119 = vmul.f32 %v53, %v77
  %v120 = vmul.f32 %v54, %v77
  %v121 = vmul.f32 %v55, %v77
  %v122 = vmul.f32 %v56, %v77
  %v123 = vmul.f32 %v57, %v77
  %v124 = vmul.f32 %v58, %v77
  %v125 = vmul.f32 %v59, %v77
  %v126 = vmul.f32 %v60, %v77
  %v127 = vmul.f32 %v61, %v77
  %v128 = vmul.f32 %v62, %v77
  %v129 = vmul.f32 %v63, %v77
  %v130 = vmul.f32 %v64, %v77
  %v131 = vmul.f32 %v65, %v77
  %v132 = vmul.f32 %v66, %v77
  %v133 = vmul.f32 %v67, %v77
  %v134 = vmul.f32 %v68, %v77
  %v135 = vmul.f32 %v69, %v77
  %v136 = vmul.f32 %v70, %v77
  %v137 = vmul.f32 %v71, %v77
  %v138 = vmul.f32 %v72, %v77
  %v139 = vmul.f32 %v73, %v77
  %v140 = vmul.f32 %v74, %v77
  %v141 = vmul.f32 %v75, %v77
  %vm142 = vcmask 31744
  %143 = vst.msk [vmem:[%s2] sm:$0xff] %vm142, %v78
  %144 = vst.msk [vmem:[%s2 + $0x8] sm:$0xff] %vm142, %v79
  %145 = vst.msk [vmem:[%s2 + $0x10] sm:$0xff] %vm142, %v80
  %146 = vst.msk [vmem:[%s2 + $0x18] sm:$0xff] %vm142, %v81
  %147 = vst.msk [vmem:[%s2 + $0x20] sm:$0xff] %vm142, %v82
  %148 = vst.msk [vmem:[%s2 + $0x28] sm:$0xff] %vm142, %v83
  %149 = vst.msk [vmem:[%s2 + $0x30] sm:$0xff] %vm142, %v84
  %150 = vst.msk [vmem:[%s2 + $0x38] sm:$0xff] %vm142, %v85
  %151 = vst.msk [vmem:[%s2 + $0x40] sm:$0xff] %vm142, %v86
  %152 = vst.msk [vmem:[%s2 + $0x48] sm:$0xff] %vm142, %v87
  %153 = vst.msk [vmem:[%s2 + $0x50] sm:$0xff] %vm142, %v88
  %154 = vst.msk [vmem:[%s2 + $0x58] sm:$0xff] %vm142, %v89
  %155 = vst.msk [vmem:[%s2 + $0x60] sm:$0xff] %vm142, %v90
  %156 = vst.msk [vmem:[%s2 + $0x68] sm:$0xff] %vm142, %v91
  %157 = vst.msk [vmem:[%s2 + $0x70] sm:$0xff] %vm142, %v92
  %158 = vst.msk [vmem:[%s2 + $0x78] sm:$0xff] %vm142, %v93
  %159 = vst.msk [vmem:[%s2 + $0x80] sm:$0xff] %vm142, %v94
  %160 = vst.msk [vmem:[%s2 + $0x88] sm:$0xff] %vm142, %v95
  %161 = vst.msk [vmem:[%s2 + $0x90] sm:$0xff] %vm142, %v96
  %162 = vst.msk [vmem:[%s2 + $0x98] sm:$0xff] %vm142, %v97
  %163 = vst.msk [vmem:[%s2 + $0xa0] sm:$0xff] %vm142, %v98
  %164 = vst.msk [vmem:[%s2 + $0xa8] sm:$0xff] %vm142, %v99
  %165 = vst.msk [vmem:[%s2 + $0xb0] sm:$0xff] %vm142, %v100
  %166 = vst.msk [vmem:[%s2 + $0xb8] sm:$0xff] %vm142, %v101
  %167 = vst.msk [vmem:[%s2 + $0xc0] sm:$0xff] %vm142, %v102
  %168 = vst.msk [vmem:[%s2 + $0xc8] sm:$0xff] %vm142, %v103
  %169 = vst.msk [vmem:[%s2 + $0xd0] sm:$0xff] %vm142, %v104
  %170 = vst.msk [vmem:[%s2 + $0xd8] sm:$0xff] %vm142, %v105
  %171 = vst.msk [vmem:[%s2 + $0xe0] sm:$0xff] %vm142, %v106
  %172 = vst.msk [vmem:[%s2 + $0xe8] sm:$0xff] %vm142, %v107
  %173 = vst.msk [vmem:[%s2 + $0xf0] sm:$0xff] %vm142, %v108
  %174 = vst.msk [vmem:[%s2 + $0xf8] sm:$0xff] %vm142, %v109
  %175 = vst.msk [vmem:[%s2 + $0x100] sm:$0xff] %vm142, %v110
  %176 = vst.msk [vmem:[%s2 + $0x108] sm:$0xff] %vm142, %v111
  %177 = vst.msk [vmem:[%s2 + $0x110] sm:$0xff] %vm142, %v112
  %178 = vst.msk [vmem:[%s2 + $0x118] sm:$0xff] %vm142, %v113
  %179 = vst.msk [vmem:[%s2 + $0x120] sm:$0xff] %vm142, %v114
  %180 = vst.msk [vmem:[%s2 + $0x128] sm:$0xff] %vm142, %v115
  %181 = vst.msk [vmem:[%s2 + $0x130] sm:$0xff] %vm142, %v116
  %182 = vst.msk [vmem:[%s2 + $0x138] sm:$0xff] %vm142, %v117
  %183 = vst.msk [vmem:[%s2 + $0x140] sm:$0xff] %vm142, %v118
  %184 = vst.msk [vmem:[%s2 + $0x148] sm:$0xff] %vm142, %v119
  %185 = vst.msk [vmem:[%s2 + $0x150] sm:$0xff] %vm142, %v120
  %186 = vst.msk [vmem:[%s2 + $0x158] sm:$0xff] %vm142, %v121
  %187 = vst.msk [vmem:[%s2 + $0x160] sm:$0xff] %vm142, %v122
  %188 = vst.msk [vmem:[%s2 + $0x168] sm:$0xff] %vm142, %v123
  %189 = vst.msk [vmem:[%s2 + $0x170] sm:$0xff] %vm142, %v124
  %190 = vst.msk [vmem:[%s2 + $0x178] sm:$0xff] %vm142, %v125
  %191 = vst.msk [vmem:[%s2 + $0x180] sm:$0xff] %vm142, %v126
  %192 = vst.msk [vmem:[%s2 + $0x188] sm:$0xff] %vm142, %v127
  %193 = vst.msk [vmem:[%s2 + $0x190] sm:$0xff] %vm142, %v128
  %194 = vst.msk [vmem:[%s2 + $0x198] sm:$0xff] %vm142, %v129
  %195 = vst.msk [vmem:[%s2 + $0x1a0] sm:$0xff] %vm142, %v130
  %196 = vst.msk [vmem:[%s2 + $0x1a8] sm:$0xff] %vm142, %v131
  %197 = vst.msk [vmem:[%s2 + $0x1b0] sm:$0xff] %vm142, %v132
  %198 = vst.msk [vmem:[%s2 + $0x1b8] sm:$0xff] %vm142, %v133
  %199 = vst.msk [vmem:[%s2 + $0x1c0] sm:$0xff] %vm142, %v134
  %200 = vst.msk [vmem:[%s2 + $0x1c8] sm:$0xff] %vm142, %v135
  %201 = vst.msk [vmem:[%s2 + $0x1d0] sm:$0xff] %vm142, %v136
  %202 = vst.msk [vmem:[%s2 + $0x1d8] sm:$0xff] %vm142, %v137
  %203 = vst.msk [vmem:[%s2 + $0x1e0] sm:$0xff] %vm142, %v138
  %204 = vst.msk [vmem:[%s2 + $0x1e8] sm:$0xff] %vm142, %v139
  %205 = vst.msk [vmem:[%s2 + $0x1f0] sm:$0xff] %vm142, %v140
  %206 = vst.msk [vmem:[%s2 + $0x1f8] sm:$0xff] %vm142, %v141
  // Predicated region
  $region10: #{resblock_forward.5} parent=0 // pred_check
    _
  $region11: #{resblock_forward.5} parent=0 // pred_check_branch
    %208 = sbr.rel (0) target = $region13
  $region12: #{resblock_forward.5} parent=0 // pred_region
    _
  $region13: #{resblock_forward.5} parent=0 // pred_fallthru
    _
  // Predicated region
  $region14: #{resblock_forward.5} parent=0 // pred_check
    _
  $region15: #{resblock_forward.5} parent=0 // pred_check_branch
    %210 = sbr.rel (0) target = $region17
  $region16: #{resblock_forward.5} parent=0 // pred_region
    _
  $region17: #{resblock_forward.5} parent=0 // pred_fallthru
    _

// kernel: resblock_forward.4
$region0: #{resblock_forward.4}
  #allocation0 [shape = 'u32[]', space=smem, size = 0x4, offset = 0x4, fixed_abs, tag = 'smem constant byte address 0x4 - core index']
  #allocation1 [shape = 'u32[144,128]{1,0:T(1,128)}', space=vmem, size = 0x12000, scoped, tag = 'internal scratch']
  %s0 = inlined_call_operand.vmem [shape: f32[512,36], index: 0, kind: input, shape index: {}]
  %s1 = inlined_call_operand.vmem [shape: f32[36,4], index: 1, kind: input, shape index: {}]
  %s2 = inlined_call_operand.vmem [shape: f32[1,4], index: 2, kind: input, shape index: {}]
  %s3 = inlined_call_operand.vmem [shape: f32[512,4], index: 3, kind: input, shape index: {}]
  %s4 = inlined_call_operand.vmem [shape: f32[512,4], index: 4, kind: output, shape index: {0}]
  %s5 = inlined_call_operand.hbm [shape: f32[1,1,1], index: 5, kind: output, shape index: {1}]
  %6 = xla_tuple %s4, %s5
  %s7 = sld [smem:[#allocation0]]
  $region34: #{resblock_forward.4} parent=0
    _
  %s9 = ssub.s32 1, %s7
  %s10 = scalar_select 0, %s9, %s7
  $region1: #{resblock_forward.4} parent=0
    #allocation2 [shape = 'u8[512]{0}', space=vmem, size = 0x400, scoped, tag = 'output window, operand 1, single buffered']
    #allocation3 [shape = 's32[1]{0}', space=sflag, size = 0x4, scoped, tag = 'scoped memory for resblock_forward.4']
    %11 = vsyncpa [#allocation3], 0
    // Predicated region
    $region2: #{resblock_forward.4} parent=1 // pred_check
      _
    $region3: #{resblock_forward.4} parent=1 // pred_check_branch
      %13 = sbr.rel (0) target = $region5
    $region4: #{resblock_forward.4} parent=1 // pred_region
      _
    $region5: #{resblock_forward.4} parent=1 // pred_fallthru
      _
    // Predicated region
    $region6: #{resblock_forward.4} parent=1 // pred_check
      _
    $region7: #{resblock_forward.4} parent=1 // pred_check_branch
      %15 = sbr.rel (0) target = $region9
    $region8: #{resblock_forward.4} parent=1 // pred_region
      _
    $region9: #{resblock_forward.4} parent=1 // pred_fallthru
      _
    // Predicated region
    $region10: #{resblock_forward.4} parent=1 // pred_check
      _
    $region11: #{resblock_forward.4} parent=1 // pred_check_branch
      %17 = sbr.rel (0) target = $region13
    $region12: #{resblock_forward.4} parent=1 // pred_region
      _
    $region13: #{resblock_forward.4} parent=1 // pred_fallthru
      _
    // Predicated region
    $region14: #{resblock_forward.4} parent=1 // pred_check
      _
    $region15: #{resblock_forward.4} parent=1 // pred_check_branch
      %19 = sbr.rel (0) target = $region17
    $region16: #{resblock_forward.4} parent=1 // pred_region
      _
    $region17: #{resblock_forward.4} parent=1 // pred_fallthru
      _
    %v20 = vld [vmem:[%s0] sm:$0xff]
    %v21 = vld [vmem:[%s0 + $0x8] sm:$0xff]
    %v22 = vld [vmem:[%s0 + $0x10] sm:$0xff]
    %v23 = vld [vmem:[%s0 + $0x18] sm:$0xff]
    %v24 = vld [vmem:[%s0 + $0x20] sm:$0xff]
    %v25 = vld [vmem:[%s0 + $0x28] sm:$0xff]
    %v26 = vld [vmem:[%s0 + $0x30] sm:$0xff]
    %v27 = vld [vmem:[%s0 + $0x38] sm:$0xff]
    %v28 = vld [vmem:[%s0 + $0x40] sm:$0xff]
    %v29 = vld [vmem:[%s0 + $0x48] sm:$0xff]
    %v30 = vld [vmem:[%s0 + $0x50] sm:$0xff]
    %v31 = vld [vmem:[%s0 + $0x58] sm:$0xff]
    %v32 = vld [vmem:[%s0 + $0x60] sm:$0xff]
    %v33 = vld [vmem:[%s0 + $0x68] sm:$0xff]
    %v34 = vld [vmem:[%s0 + $0x70] sm:$0xff]
    %v35 = vld [vmem:[%s0 + $0x78] sm:$0xff]
    %v36 = vld [vmem:[%s0 + $0x80] sm:$0xff]
    %v37 = vld [vmem:[%s0 + $0x88] sm:$0xff]
    %v38 = vld [vmem:[%s0 + $0x90] sm:$0xff]
    %v39 = vld [vmem:[%s0 + $0x98] sm:$0xff]
    %v40 = vld [vmem:[%s0 + $0xa0] sm:$0xff]
    %v41 = vld [vmem:[%s0 + $0xa8] sm:$0xff]
    %v42 = vld [vmem:[%s0 + $0xb0] sm:$0xff]
    %v43 = vld [vmem:[%s0 + $0xb8] sm:$0xff]
    %v44 = vld [vmem:[%s0 + $0xc0] sm:$0xff]
    %v45 = vld [vmem:[%s0 + $0xc8] sm:$0xff]
    %v46 = vld [vmem:[%s0 + $0xd0] sm:$0xff]
    %v47 = vld [vmem:[%s0 + $0xd8] sm:$0xff]
    %v48 = vld [vmem:[%s0 + $0xe0] sm:$0xff]
    %v49 = vld [vmem:[%s0 + $0xe8] sm:$0xff]
    %v50 = vld [vmem:[%s0 + $0xf0] sm:$0xff]
    %v51 = vld [vmem:[%s0 + $0xf8] sm:$0xff]
    %v52 = vld [vmem:[%s0 + $0x100] sm:$0xff]
    %v53 = vld [vmem:[%s0 + $0x108] sm:$0xff]
    %v54 = vld [vmem:[%s0 + $0x110] sm:$0xff]
    %v55 = vld [vmem:[%s0 + $0x118] sm:$0xff]
    %v56 = vld [vmem:[%s0 + $0x120] sm:$0xff]
    %v57 = vld [vmem:[%s0 + $0x128] sm:$0xff]
    %v58 = vld [vmem:[%s0 + $0x130] sm:$0xff]
    %v59 = vld [vmem:[%s0 + $0x138] sm:$0xff]
    %v60 = vld [vmem:[%s0 + $0x140] sm:$0xff]
    %v61 = vld [vmem:[%s0 + $0x148] sm:$0xff]
    %v62 = vld [vmem:[%s0 + $0x150] sm:$0xff]
    %v63 = vld [vmem:[%s0 + $0x158] sm:$0xff]
    %v64 = vld [vmem:[%s0 + $0x160] sm:$0xff]
    %v65 = vld [vmem:[%s0 + $0x168] sm:$0xff]
    %v66 = vld [vmem:[%s0 + $0x170] sm:$0xff]
    %v67 = vld [vmem:[%s0 + $0x178] sm:$0xff]
    %v68 = vld [vmem:[%s0 + $0x180] sm:$0xff]
    %v69 = vld [vmem:[%s0 + $0x188] sm:$0xff]
    %v70 = vld [vmem:[%s0 + $0x190] sm:$0xff]
    %v71 = vld [vmem:[%s0 + $0x198] sm:$0xff]
    %v72 = vld [vmem:[%s0 + $0x1a0] sm:$0xff]
    %v73 = vld [vmem:[%s0 + $0x1a8] sm:$0xff]
    %v74 = vld [vmem:[%s0 + $0x1b0] sm:$0xff]
    %v75 = vld [vmem:[%s0 + $0x1b8] sm:$0xff]
    %v76 = vld [vmem:[%s0 + $0x1c0] sm:$0xff]
    %v77 = vld [vmem:[%s0 + $0x1c8] sm:$0xff]
    %v78 = vld [vmem:[%s0 + $0x1d0] sm:$0xff]
    %v79 = vld [vmem:[%s0 + $0x1d8] sm:$0xff]
    %v80 = vld [vmem:[%s0 + $0x1e0] sm:$0xff]
    %v81 = vld [vmem:[%s0 + $0x1e8] sm:$0xff]
    %v82 = vld [vmem:[%s0 + $0x1f0] sm:$0xff]
    %v83 = vld [vmem:[%s0 + $0x1f8] sm:$0xff]
    %v84 = vld [vmem:[%s1] sm:$0xff]
    %v85 = vld [vmem:[%s1 + $0x8] sm:$0xff]
    %v86 = vld [vmem:[%s1 + $0x10] sm:$0xff]
    %v87 = vld [vmem:[%s1 + $0x18] sm:$0xff]
    %v88 = vld [vmem:[%s1 + $0x20] sm:$0xf]
    %v89 = vld [vmem:[%s2] sm:$0x1]
    %v91 = vlaneseq
    %v92 = vshrl.u32 %v91, 7
    %v93 = vsub.s32 0, %v92
    %v94 = vrot.slane %v89, %v93
    %vm96 = vcmask 293888
    %v98 = vsel %vm96, %v20, 0
    %v101 = vsel %vm96, %v21, 0
    %v104 = vsel %vm96, %v22, 0
    %v107 = vsel %vm96, %v23, 0
    %v110 = vsel %vm96, %v24, 0
    %v113 = vsel %vm96, %v25, 0
    %v116 = vsel %vm96, %v26, 0
    %v119 = vsel %vm96, %v27, 0
    %v122 = vsel %vm96, %v28, 0
    %v125 = vsel %vm96, %v29, 0
    %v128 = vsel %vm96, %v30, 0
    %v131 = vsel %vm96, %v31, 0
    %v134 = vsel %vm96, %v32, 0
    %v137 = vsel %vm96, %v33, 0
    %v140 = vsel %vm96, %v34, 0
    %v143 = vsel %vm96, %v35, 0
    %v146 = vsel %vm96, %v36, 0
    %v149 = vsel %vm96, %v37, 0
    %v152 = vsel %vm96, %v38, 0
    %v155 = vsel %vm96, %v39, 0
    %v158 = vsel %vm96, %v40, 0
    %v161 = vsel %vm96, %v41, 0
    %v164 = vsel %vm96, %v42, 0
    %v167 = vsel %vm96, %v43, 0
    %v170 = vsel %vm96, %v44, 0
    %v173 = vsel %vm96, %v45, 0
    %v176 = vsel %vm96, %v46, 0
    %v179 = vsel %vm96, %v47, 0
    %v182 = vsel %vm96, %v48, 0
    %v185 = vsel %vm96, %v49, 0
    %v188 = vsel %vm96, %v50, 0
    %v191 = vsel %vm96, %v51, 0
    %v194 = vsel %vm96, %v52, 0
    %v197 = vsel %vm96, %v53, 0
    %v200 = vsel %vm96, %v54, 0
    %v203 = vsel %vm96, %v55, 0
    %v206 = vsel %vm96, %v56, 0
    %v209 = vsel %vm96, %v57, 0
    %v212 = vsel %vm96, %v58, 0
    %v215 = vsel %vm96, %v59, 0
    %v218 = vsel %vm96, %v60, 0
    %v221 = vsel %vm96, %v61, 0
    %v224 = vsel %vm96, %v62, 0
    %v227 = vsel %vm96, %v63, 0
    %v230 = vsel %vm96, %v64, 0
    %v233 = vsel %vm96, %v65, 0
    %v236 = vsel %vm96, %v66, 0
    %v239 = vsel %vm96, %v67, 0
    %v242 = vsel %vm96, %v68, 0
    %v245 = vsel %vm96, %v69, 0
    %v248 = vsel %vm96, %v70, 0
    %v251 = vsel %vm96, %v71, 0
    %v254 = vsel %vm96, %v72, 0
    %v257 = vsel %vm96, %v73, 0
    %v260 = vsel %vm96, %v74, 0
    %v263 = vsel %vm96, %v75, 0
    %v266 = vsel %vm96, %v76, 0
    %v269 = vsel %vm96, %v77, 0
    %v272 = vsel %vm96, %v78, 0
    %v275 = vsel %vm96, %v79, 0
    %v278 = vsel %vm96, %v80, 0
    %v281 = vsel %vm96, %v81, 0
    %v284 = vsel %vm96, %v82, 0
    %v287 = vsel %vm96, %v83, 0
    %vm289 = vcmask 1043456
    %v291 = vsel %vm289, %v88, 0
    %293 = vmatprep.subr.mxu0 0.0
    %294 = vmatpush1.msra.mxu0 0.0
    %295 = vmatprep.subr.mxu0 0.0
    %296 = vmatpush1.msra.mxu0 0.0
    %297 = vmatprep.subr.mxu0 0.0
    %298 = vmatpush1.msra.mxu0 0.0
    %299 = vmatprep.subr.mxu0 0.0
    %300 = vmatpush1.msra.mxu0 0.0
    %301 = vmatprep.subr.mxu0 0.0
    %302 = vmatpush1.msra.mxu0 0.0
    %303 = vmatprep.subr.mxu0 0.0
    %304 = vmatpush1.msra.mxu0 0.0
    %305 = vmatprep.subr.mxu0 0.0
    %306 = vmatpush1.msra.mxu0 0.0
    %307 = vmatprep.subr.mxu0 0.0
    %308 = vmatpush1.msra.mxu0 0.0
    %309 = vmatprep.subr.mxu0 0.0
    %310 = vmatpush1.msra.mxu0 0.0
    %311 = vmatprep.subr.mxu0 0.0
    %312 = vmatpush1.msra.mxu0 0.0
    %313 = vmatprep.subr.mxu0 0.0
    %314 = vmatpush1.msra.mxu0 0.0
    %315 = vmatprep.subr.mxu0 0.0
    %316 = vmatpush1.msra.mxu0 %v291
    %317 = vmatprep.subr.mxu0 0.0
    %318 = vmatpush1.msra.mxu0 %v87
    %319 = vmatprep.subr.mxu0 0.0
    %320 = vmatpush1.msra.mxu0 %v86
    %321 = vmatprep.subr.mxu0 0.0
    %322 = vmatpush1.msra.mxu0 %v85
    %323 = vmatprep.subr.mxu0 0.0
    %324 = vmatpush1.msra.mxu0 %v84
    %325 = vmatprep.subr.mxu0 0.0
    %326 = vmatpush2.msra.mxu0 0.0
    %327 = vmatprep.subr.mxu0 0.0
    %328 = vmatpush2.msra.mxu0 0.0
    %329 = vmatprep.subr.mxu0 0.0
    %330 = vmatpush2.msra.mxu0 0.0
    %331 = vmatprep.subr.mxu0 0.0
    %332 = vmatpush2.msra.mxu0 0.0
    %333 = vmatprep.subr.mxu0 0.0
    %334 = vmatpush2.msra.mxu0 0.0
    %335 = vmatprep.subr.mxu0 0.0
    %336 = vmatpush2.msra.mxu0 0.0
    %337 = vmatprep.subr.mxu0 0.0
    %338 = vmatpush2.msra.mxu0 0.0
    %339 = vmatprep.subr.mxu0 0.0
    %340 = vmatpush2.msra.mxu0 0.0
    %341 = vmatprep.subr.mxu0 0.0
    %342 = vmatpush2.msra.mxu0 0.0
    %343 = vmatprep.subr.mxu0 0.0
    %344 = vmatpush2.msra.mxu0 0.0
    %345 = vmatprep.subr.mxu0 0.0
    %346 = vmatpush2.msra.mxu0 0.0
    %347 = vmatprep.subr.mxu0 0.0
    %348 = vmatpush2.msra.mxu0 0.0
    %349 = vmatprep.subr.mxu0 0.0
    %350 = vmatpush2.msra.mxu0 0.0
    %351 = vmatprep.subr.mxu0 0.0
    %352 = vmatpush2.msra.mxu0 0.0
    %353 = vmatprep.subr.mxu0 0.0
    %354 = vmatpush2.msra.mxu0 0.0
    %355 = vmatprep.subr.mxu0 0.0
    %356 = vmatpush2.msra.mxu0 0.0
    %357 = vmatprep.mubr.f32.mxu0 0.0
    %358 = vmatmul.mubr.f32.gmra.mxu0 %v98
    %v359 = vpop.f32.mrf.mxu0
    %v360 = vadd.f32 %v94, %v359
    %v361 = vpop.f32.mrf.mxu0
    %362 = vmatprep.mubr.f32.mxu0 0.0
    %363 = vmatmul.mubr.f32.gmra.mxu0 %v101
    %v364 = vpop.f32.mrf.mxu0
    %v365 = vadd.f32 %v94, %v364
    %v366 = vpop.f32.mrf.mxu0
    %367 = vmatprep.mubr.f32.mxu0 0.0
    %368 = vmatmul.mubr.f32.gmra.mxu0 %v104
    %v369 = vpop.f32.mrf.mxu0
    %v370 = vadd.f32 %v94, %v369
    %v371 = vpop.f32.mrf.mxu0
    %372 = vmatprep.mubr.f32.mxu0 0.0
    %373 = vmatmul.mubr.f32.gmra.mxu0 %v107
    %v374 = vpop.f32.mrf.mxu0
    %v375 = vadd.f32 %v94, %v374
    %v376 = vpop.f32.mrf.mxu0
    %377 = vmatprep.mubr.f32.mxu0 0.0
    %378 = vmatmul.mubr.f32.gmra.mxu0 %v110
    %v379 = vpop.f32.mrf.mxu0
    %v380 = vadd.f32 %v94, %v379
    %v381 = vpop.f32.mrf.mxu0
    %382 = vmatprep.mubr.f32.mxu0 0.0
    %383 = vmatmul.mubr.f32.gmra.mxu0 %v113
    %v384 = vpop.f32.mrf.mxu0
    %v385 = vadd.f32 %v94, %v384
    %v386 = vpop.f32.mrf.mxu0
    %387 = vmatprep.mubr.f32.mxu0 0.0
    %388 = vmatmul.mubr.f32.gmra.mxu0 %v116
    %v389 = vpop.f32.mrf.mxu0
    %v390 = vadd.f32 %v94, %v389
    %v391 = vpop.f32.mrf.mxu0
    %392 = vmatprep.mubr.f32.mxu0 0.0
    %393 = vmatmul.mubr.f32.gmra.mxu0 %v119
    %v394 = vpop.f32.mrf.mxu0
    %v395 = vadd.f32 %v94, %v394
    %v396 = vpop.f32.mrf.mxu0
    %397 = vmatprep.mubr.f32.mxu0 0.0
    %398 = vmatmul.mubr.f32.gmra.mxu0 %v122
    %v399 = vpop.f32.mrf.mxu0
    %v400 = vadd.f32 %v94, %v399
    %v401 = vpop.f32.mrf.mxu0
    %402 = vmatprep.mubr.f32.mxu0 0.0
    %403 = vmatmul.mubr.f32.gmra.mxu0 %v125
    %v404 = vpop.f32.mrf.mxu0
    %v405 = vadd.f32 %v94, %v404
    %v406 = vpop.f32.mrf.mxu0
    %407 = vmatprep.mubr.f32.mxu0 0.0
    %408 = vmatmul.mubr.f32.gmra.mxu0 %v128
    %v409 = vpop.f32.mrf.mxu0
    %v410 = vadd.f32 %v94, %v409
    %v411 = vpop.f32.mrf.mxu0
    %412 = vmatprep.mubr.f32.mxu0 0.0
    %413 = vmatmul.mubr.f32.gmra.mxu0 %v131
    %v414 = vpop.f32.mrf.mxu0
    %v415 = vadd.f32 %v94, %v414
    %v416 = vpop.f32.mrf.mxu0
    %417 = vmatprep.mubr.f32.mxu0 0.0
    %418 = vmatmul.mubr.f32.gmra.mxu0 %v134
    %v419 = vpop.f32.mrf.mxu0
    %v420 = vadd.f32 %v94, %v419
    %v421 = vpop.f32.mrf.mxu0
    %422 = vmatprep.mubr.f32.mxu0 0.0
    %423 = vmatmul.mubr.f32.gmra.mxu0 %v137
    %v424 = vpop.f32.mrf.mxu0
    %v425 = vadd.f32 %v94, %v424
    %v426 = vpop.f32.mrf.mxu0
    %427 = vmatprep.mubr.f32.mxu0 0.0
    %428 = vmatmul.mubr.f32.gmra.mxu0 %v140
    %v429 = vpop.f32.mrf.mxu0
    %v430 = vadd.f32 %v94, %v429
    %v431 = vpop.f32.mrf.mxu0
    %432 = vmatprep.mubr.f32.mxu0 0.0
    %433 = vmatmul.mubr.f32.gmra.mxu0 %v143
    %v434 = vpop.f32.mrf.mxu0
    %v435 = vadd.f32 %v94, %v434
    %v436 = vpop.f32.mrf.mxu0
    %437 = vmatprep.mubr.f32.mxu0 0.0
    %438 = vmatmul.mubr.f32.gmra.mxu0 %v146
    %v439 = vpop.f32.mrf.mxu0
    %v440 = vadd.f32 %v94, %v439
    %v441 = vpop.f32.mrf.mxu0
    %442 = vmatprep.mubr.f32.mxu0 0.0
    %443 = vmatmul.mubr.f32.gmra.mxu0 %v149
    %v444 = vpop.f32.mrf.mxu0
    %v445 = vadd.f32 %v94, %v444
    %v446 = vpop.f32.mrf.mxu0
    %447 = vmatprep.mubr.f32.mxu0 0.0
    %448 = vmatmul.mubr.f32.gmra.mxu0 %v152
    %v449 = vpop.f32.mrf.mxu0
    %v450 = vadd.f32 %v94, %v449
    %v451 = vpop.f32.mrf.mxu0
    %452 = vmatprep.mubr.f32.mxu0 0.0
    %453 = vmatmul.mubr.f32.gmra.mxu0 %v155
    %v454 = vpop.f32.mrf.mxu0
    %v455 = vadd.f32 %v94, %v454
    %v456 = vpop.f32.mrf.mxu0
    %457 = vmatprep.mubr.f32.mxu0 0.0
    %458 = vmatmul.mubr.f32.gmra.mxu0 %v158
    %v459 = vpop.f32.mrf.mxu0
    %v460 = vadd.f32 %v94, %v459
    %v461 = vpop.f32.mrf.mxu0
    %462 = vmatprep.mubr.f32.mxu0 0.0
    %463 = vmatmul.mubr.f32.gmra.mxu0 %v161
    %v464 = vpop.f32.mrf.mxu0
    %v465 = vadd.f32 %v94, %v464
    %v466 = vpop.f32.mrf.mxu0
    %467 = vmatprep.mubr.f32.mxu0 0.0
    %468 = vmatmul.mubr.f32.gmra.mxu0 %v164
    %v469 = vpop.f32.mrf.mxu0
    %v470 = vadd.f32 %v94, %v469
    %v471 = vpop.f32.mrf.mxu0
    %472 = vmatprep.mubr.f32.mxu0 0.0
    %473 = vmatmul.mubr.f32.gmra.mxu0 %v167
    %v474 = vpop.f32.mrf.mxu0
    %v475 = vadd.f32 %v94, %v474
    %v476 = vpop.f32.mrf.mxu0
    %477 = vmatprep.mubr.f32.mxu0 0.0
    %478 = vmatmul.mubr.f32.gmra.mxu0 %v170
    %v479 = vpop.f32.mrf.mxu0
    %v480 = vadd.f32 %v94, %v479
    %v481 = vpop.f32.mrf.mxu0
    %482 = vmatprep.mubr.f32.mxu0 0.0
    %483 = vmatmul.mubr.f32.gmra.mxu0 %v173
    %v484 = vpop.f32.mrf.mxu0
    %v485 = vadd.f32 %v94, %v484
    %v486 = vpop.f32.mrf.mxu0
    %487 = vmatprep.mubr.f32.mxu0 0.0
    %488 = vmatmul.mubr.f32.gmra.mxu0 %v176
    %v489 = vpop.f32.mrf.mxu0
    %v490 = vadd.f32 %v94, %v489
    %v491 = vpop.f32.mrf.mxu0
    %492 = vmatprep.mubr.f32.mxu0 0.0
    %493 = vmatmul.mubr.f32.gmra.mxu0 %v179
    %v494 = vpop.f32.mrf.mxu0
    %v495 = vadd.f32 %v94, %v494
    %v496 = vpop.f32.mrf.mxu0
    %497 = vmatprep.mubr.f32.mxu0 0.0
    %498 = vmatmul.mubr.f32.gmra.mxu0 %v182
    %v499 = vpop.f32.mrf.mxu0
    %v500 = vadd.f32 %v94, %v499
    %v501 = vpop.f32.mrf.mxu0
    %502 = vmatprep.mubr.f32.mxu0 0.0
    %503 = vmatmul.mubr.f32.gmra.mxu0 %v185
    %v504 = vpop.f32.mrf.mxu0
    %v505 = vadd.f32 %v94, %v504
    %v506 = vpop.f32.mrf.mxu0
    %507 = vmatprep.mubr.f32.mxu0 0.0
    %508 = vmatmul.mubr.f32.gmra.mxu0 %v188
    %v509 = vpop.f32.mrf.mxu0
    %v510 = vadd.f32 %v94, %v509
    %v511 = vpop.f32.mrf.mxu0
    %512 = vmatprep.mubr.f32.mxu0 0.0
    %513 = vmatmul.mubr.f32.gmra.mxu0 %v191
    %v514 = vpop.f32.mrf.mxu0
    %v515 = vadd.f32 %v94, %v514
    %v516 = vpop.f32.mrf.mxu0
    %517 = vmatprep.mubr.f32.mxu0 0.0
    %518 = vmatmul.mubr.f32.gmra.mxu0 %v194
    %v519 = vpop.f32.mrf.mxu0
    %v520 = vadd.f32 %v94, %v519
    %v521 = vpop.f32.mrf.mxu0
    %522 = vmatprep.mubr.f32.mxu0 0.0
    %523 = vmatmul.mubr.f32.gmra.mxu0 %v197
    %v524 = vpop.f32.mrf.mxu0
    %v525 = vadd.f32 %v94, %v524
    %v526 = vpop.f32.mrf.mxu0
    %527 = vmatprep.mubr.f32.mxu0 0.0
    %528 = vmatmul.mubr.f32.gmra.mxu0 %v200
    %v529 = vpop.f32.mrf.mxu0
    %v530 = vadd.f32 %v94, %v529
    %v531 = vpop.f32.mrf.mxu0
    %532 = vmatprep.mubr.f32.mxu0 0.0
    %533 = vmatmul.mubr.f32.gmra.mxu0 %v203
    %v534 = vpop.f32.mrf.mxu0
    %v535 = vadd.f32 %v94, %v534
    %v536 = vpop.f32.mrf.mxu0
    %537 = vmatprep.mubr.f32.mxu0 0.0
    %538 = vmatmul.mubr.f32.gmra.mxu0 %v206
    %v539 = vpop.f32.mrf.mxu0
    %v540 = vadd.f32 %v94, %v539
    %v541 = vpop.f32.mrf.mxu0
    %542 = vmatprep.mubr.f32.mxu0 0.0
    %543 = vmatmul.mubr.f32.gmra.mxu0 %v209
    %v544 = vpop.f32.mrf.mxu0
    %v545 = vadd.f32 %v94, %v544
    %v546 = vpop.f32.mrf.mxu0
    %547 = vmatprep.mubr.f32.mxu0 0.0
    %548 = vmatmul.mubr.f32.gmra.mxu0 %v212
    %v549 = vpop.f32.mrf.mxu0
    %v550 = vadd.f32 %v94, %v549
    %v551 = vpop.f32.mrf.mxu0
    %552 = vmatprep.mubr.f32.mxu0 0.0
    %553 = vmatmul.mubr.f32.gmra.mxu0 %v215
    %v554 = vpop.f32.mrf.mxu0
    %v555 = vadd.f32 %v94, %v554
    %v556 = vpop.f32.mrf.mxu0
    %557 = vmatprep.mubr.f32.mxu0 0.0
    %558 = vmatmul.mubr.f32.gmra.mxu0 %v218
    %v559 = vpop.f32.mrf.mxu0
    %v560 = vadd.f32 %v94, %v559
    %v561 = vpop.f32.mrf.mxu0
    %562 = vmatprep.mubr.f32.mxu0 0.0
    %563 = vmatmul.mubr.f32.gmra.mxu0 %v221
    %v564 = vpop.f32.mrf.mxu0
    %v565 = vadd.f32 %v94, %v564
    %v566 = vpop.f32.mrf.mxu0
    %567 = vmatprep.mubr.f32.mxu0 0.0
    %568 = vmatmul.mubr.f32.gmra.mxu0 %v224
    %v569 = vpop.f32.mrf.mxu0
    %v570 = vadd.f32 %v94, %v569
    %v571 = vpop.f32.mrf.mxu0
    %572 = vmatprep.mubr.f32.mxu0 0.0
    %573 = vmatmul.mubr.f32.gmra.mxu0 %v227
    %v574 = vpop.f32.mrf.mxu0
    %v575 = vadd.f32 %v94, %v574
    %v576 = vpop.f32.mrf.mxu0
    %577 = vmatprep.mubr.f32.mxu0 0.0
    %578 = vmatmul.mubr.f32.gmra.mxu0 %v230
    %v579 = vpop.f32.mrf.mxu0
    %v580 = vadd.f32 %v94, %v579
    %v581 = vpop.f32.mrf.mxu0
    %582 = vmatprep.mubr.f32.mxu0 0.0
    %583 = vmatmul.mubr.f32.gmra.mxu0 %v233
    %v584 = vpop.f32.mrf.mxu0
    %v585 = vadd.f32 %v94, %v584
    %v586 = vpop.f32.mrf.mxu0
    %587 = vmatprep.mubr.f32.mxu0 0.0
    %588 = vmatmul.mubr.f32.gmra.mxu0 %v236
    %v589 = vpop.f32.mrf.mxu0
    %v590 = vadd.f32 %v94, %v589
    %v591 = vpop.f32.mrf.mxu0
    %592 = vmatprep.mubr.f32.mxu0 0.0
    %593 = vmatmul.mubr.f32.gmra.mxu0 %v239
    %v594 = vpop.f32.mrf.mxu0
    %v595 = vadd.f32 %v94, %v594
    %v596 = vpop.f32.mrf.mxu0
    %597 = vmatprep.mubr.f32.mxu0 0.0
    %598 = vmatmul.mubr.f32.gmra.mxu0 %v242
    %v599 = vpop.f32.mrf.mxu0
    %v600 = vadd.f32 %v94, %v599
    %v601 = vpop.f32.mrf.mxu0
    %602 = vmatprep.mubr.f32.mxu0 0.0
    %603 = vmatmul.mubr.f32.gmra.mxu0 %v245
    %v604 = vpop.f32.mrf.mxu0
    %v605 = vadd.f32 %v94, %v604
    %v606 = vpop.f32.mrf.mxu0
    %607 = vmatprep.mubr.f32.mxu0 0.0
    %608 = vmatmul.mubr.f32.gmra.mxu0 %v248
    %v609 = vpop.f32.mrf.mxu0
    %v610 = vadd.f32 %v94, %v609
    %v611 = vpop.f32.mrf.mxu0
    %612 = vmatprep.mubr.f32.mxu0 0.0
    %613 = vmatmul.mubr.f32.gmra.mxu0 %v251
    %v614 = vpop.f32.mrf.mxu0
    %v615 = vadd.f32 %v94, %v614
    %v616 = vpop.f32.mrf.mxu0
    %617 = vmatprep.mubr.f32.mxu0 0.0
    %618 = vmatmul.mubr.f32.gmra.mxu0 %v254
    %v619 = vpop.f32.mrf.mxu0
    %v620 = vadd.f32 %v94, %v619
    %v621 = vpop.f32.mrf.mxu0
    %622 = vmatprep.mubr.f32.mxu0 0.0
    %623 = vmatmul.mubr.f32.gmra.mxu0 %v257
    %v624 = vpop.f32.mrf.mxu0
    %v625 = vadd.f32 %v94, %v624
    %v626 = vpop.f32.mrf.mxu0
    %627 = vmatprep.mubr.f32.mxu0 0.0
    %628 = vmatmul.mubr.f32.gmra.mxu0 %v260
    %v629 = vpop.f32.mrf.mxu0
    %v630 = vadd.f32 %v94, %v629
    %v631 = vpop.f32.mrf.mxu0
    %632 = vmatprep.mubr.f32.mxu0 0.0
    %633 = vmatmul.mubr.f32.gmra.mxu0 %v263
    %v634 = vpop.f32.mrf.mxu0
    %v635 = vadd.f32 %v94, %v634
    %v636 = vpop.f32.mrf.mxu0
    %637 = vmatprep.mubr.f32.mxu0 0.0
    %638 = vmatmul.mubr.f32.gmra.mxu0 %v266
    %v639 = vpop.f32.mrf.mxu0
    %v640 = vadd.f32 %v94, %v639
    %v641 = vpop.f32.mrf.mxu0
    %642 = vmatprep.mubr.f32.mxu0 0.0
    %643 = vmatmul.mubr.f32.gmra.mxu0 %v269
    %v644 = vpop.f32.mrf.mxu0
    %v645 = vadd.f32 %v94, %v644
    %v646 = vpop.f32.mrf.mxu0
    %647 = vmatprep.mubr.f32.mxu0 0.0
    %648 = vmatmul.mubr.f32.gmra.mxu0 %v272
    %v649 = vpop.f32.mrf.mxu0
    %v650 = vadd.f32 %v94, %v649
    %v651 = vpop.f32.mrf.mxu0
    %652 = vmatprep.mubr.f32.mxu0 0.0
    %653 = vmatmul.mubr.f32.gmra.mxu0 %v275
    %v654 = vpop.f32.mrf.mxu0
    %v655 = vadd.f32 %v94, %v654
    %v656 = vpop.f32.mrf.mxu0
    %657 = vmatprep.mubr.f32.mxu0 0.0
    %658 = vmatmul.mubr.f32.gmra.mxu0 %v278
    %v659 = vpop.f32.mrf.mxu0
    %v660 = vadd.f32 %v94, %v659
    %v661 = vpop.f32.mrf.mxu0
    %662 = vmatprep.mubr.f32.mxu0 0.0
    %663 = vmatmul.mubr.f32.gmra.mxu0 %v281
    %v664 = vpop.f32.mrf.mxu0
    %v665 = vadd.f32 %v94, %v664
    %v666 = vpop.f32.mrf.mxu0
    %667 = vmatprep.mubr.f32.mxu0 0.0
    %668 = vmatmul.mubr.f32.gmra.mxu0 %v284
    %v669 = vpop.f32.mrf.mxu0
    %v670 = vadd.f32 %v94, %v669
    %v671 = vpop.f32.mrf.mxu0
    %672 = vmatprep.mubr.f32.mxu0 0.0
    %673 = vmatmul.mubr.f32.gmra.mxu0 %v287
    %v674 = vpop.f32.mrf.mxu0
    %v675 = vadd.f32 %v94, %v674
    %v676 = vpop.f32.mrf.mxu0
    %677 = vdwg.mxu0
    %v678 = vld [vmem:[%s3] sm:$0xff]
    %v679 = vld [vmem:[%s3 + $0x8] sm:$0xff]
    %v680 = vld [vmem:[%s3 + $0x10] sm:$0xff]
    %v681 = vld [vmem:[%s3 + $0x18] sm:$0xff]
    %v682 = vld [vmem:[%s3 + $0x20] sm:$0xff]
    %v683 = vld [vmem:[%s3 + $0x28] sm:$0xff]
    %v684 = vld [vmem:[%s3 + $0x30] sm:$0xff]
    %v685 = vld [vmem:[%s3 + $0x38] sm:$0xff]
    %v686 = vld [vmem:[%s3 + $0x40] sm:$0xff]
    %v687 = vld [vmem:[%s3 + $0x48] sm:$0xff]
    %v688 = vld [vmem:[%s3 + $0x50] sm:$0xff]
    %v689 = vld [vmem:[%s3 + $0x58] sm:$0xff]
    %v690 = vld [vmem:[%s3 + $0x60] sm:$0xff]
    %v691 = vld [vmem:[%s3 + $0x68] sm:$0xff]
    %v692 = vld [vmem:[%s3 + $0x70] sm:$0xff]
    %v693 = vld [vmem:[%s3 + $0x78] sm:$0xff]
    %v694 = vld [vmem:[%s3 + $0x80] sm:$0xff]
    %v695 = vld [vmem:[%s3 + $0x88] sm:$0xff]
    %v696 = vld [vmem:[%s3 + $0x90] sm:$0xff]
    %v697 = vld [vmem:[%s3 + $0x98] sm:$0xff]
    %v698 = vld [vmem:[%s3 + $0xa0] sm:$0xff]
    %v699 = vld [vmem:[%s3 + $0xa8] sm:$0xff]
    %v700 = vld [vmem:[%s3 + $0xb0] sm:$0xff]
    %v701 = vld [vmem:[%s3 + $0xb8] sm:$0xff]
    %v702 = vld [vmem:[%s3 + $0xc0] sm:$0xff]
    %v703 = vld [vmem:[%s3 + $0xc8] sm:$0xff]
    %v704 = vld [vmem:[%s3 + $0xd0] sm:$0xff]
    %v705 = vld [vmem:[%s3 + $0xd8] sm:$0xff]
    %v706 = vld [vmem:[%s3 + $0xe0] sm:$0xff]
    %v707 = vld [vmem:[%s3 + $0xe8] sm:$0xff]
    %v708 = vld [vmem:[%s3 + $0xf0] sm:$0xff]
    %v709 = vld [vmem:[%s3 + $0xf8] sm:$0xff]
    %v710 = vld [vmem:[%s3 + $0x100] sm:$0xff]
    %v711 = vld [vmem:[%s3 + $0x108] sm:$0xff]
    %v712 = vld [vmem:[%s3 + $0x110] sm:$0xff]
    %v713 = vld [vmem:[%s3 + $0x118] sm:$0xff]
    %v714 = vld [vmem:[%s3 + $0x120] sm:$0xff]
    %v715 = vld [vmem:[%s3 + $0x128] sm:$0xff]
    %v716 = vld [vmem:[%s3 + $0x130] sm:$0xff]
    %v717 = vld [vmem:[%s3 + $0x138] sm:$0xff]
    %v718 = vld [vmem:[%s3 + $0x140] sm:$0xff]
    %v719 = vld [vmem:[%s3 + $0x148] sm:$0xff]
    %v720 = vld [vmem:[%s3 + $0x150] sm:$0xff]
    %v721 = vld [vmem:[%s3 + $0x158] sm:$0xff]
    %v722 = vld [vmem:[%s3 + $0x160] sm:$0xff]
    %v723 = vld [vmem:[%s3 + $0x168] sm:$0xff]
    %v724 = vld [vmem:[%s3 + $0x170] sm:$0xff]
    %v725 = vld [vmem:[%s3 + $0x178] sm:$0xff]
    %v726 = vld [vmem:[%s3 + $0x180] sm:$0xff]
    %v727 = vld [vmem:[%s3 + $0x188] sm:$0xff]
    %v728 = vld [vmem:[%s3 + $0x190] sm:$0xff]
    %v729 = vld [vmem:[%s3 + $0x198] sm:$0xff]
    %v730 = vld [vmem:[%s3 + $0x1a0] sm:$0xff]
    %v731 = vld [vmem:[%s3 + $0x1a8] sm:$0xff]
    %v732 = vld [vmem:[%s3 + $0x1b0] sm:$0xff]
    %v733 = vld [vmem:[%s3 + $0x1b8] sm:$0xff]
    %v734 = vld [vmem:[%s3 + $0x1c0] sm:$0xff]
    %v735 = vld [vmem:[%s3 + $0x1c8] sm:$0xff]
    %v736 = vld [vmem:[%s3 + $0x1d0] sm:$0xff]
    %v737 = vld [vmem:[%s3 + $0x1d8] sm:$0xff]
    %v738 = vld [vmem:[%s3 + $0x1e0] sm:$0xff]
    %v739 = vld [vmem:[%s3 + $0x1e8] sm:$0xff]
    %v740 = vld [vmem:[%s3 + $0x1f0] sm:$0xff]
    %v741 = vld [vmem:[%s3 + $0x1f8] sm:$0xff]
    %v742 = vadd.f32 %v360, %v678
    %v743 = vadd.f32 %v365, %v679
    %v744 = vadd.f32 %v370, %v680
    %v745 = vadd.f32 %v375, %v681
    %v746 = vadd.f32 %v380, %v682
    %v747 = vadd.f32 %v385, %v683
    %v748 = vadd.f32 %v390, %v684
    %v749 = vadd.f32 %v395, %v685
    %v750 = vadd.f32 %v400, %v686
    %v751 = vadd.f32 %v405, %v687
    %v752 = vadd.f32 %v410, %v688
    %v753 = vadd.f32 %v415, %v689
    %v754 = vadd.f32 %v420, %v690
    %v755 = vadd.f32 %v425, %v691
    %v756 = vadd.f32 %v430, %v692
    %v757 = vadd.f32 %v435, %v693
    %v758 = vadd.f32 %v440, %v694
    %v759 = vadd.f32 %v445, %v695
    %v760 = vadd.f32 %v450, %v696
    %v761 = vadd.f32 %v455, %v697
    %v762 = vadd.f32 %v460, %v698
    %v763 = vadd.f32 %v465, %v699
    %v764 = vadd.f32 %v470, %v700
    %v765 = vadd.f32 %v475, %v701
    %v766 = vadd.f32 %v480, %v702
    %v767 = vadd.f32 %v485, %v703
    %v768 = vadd.f32 %v490, %v704
    %v769 = vadd.f32 %v495, %v705
    %v770 = vadd.f32 %v500, %v706
    %v771 = vadd.f32 %v505, %v707
    %v772 = vadd.f32 %v510, %v708
    %v773 = vadd.f32 %v515, %v709
    %v774 = vadd.f32 %v520, %v710
    %v775 = vadd.f32 %v525, %v711
    %v776 = vadd.f32 %v530, %v712
    %v777 = vadd.f32 %v535, %v713
    %v778 = vadd.f32 %v540, %v714
    %v779 = vadd.f32 %v545, %v715
    %v780 = vadd.f32 %v550, %v716
    %v781 = vadd.f32 %v555, %v717
    %v782 = vadd.f32 %v560, %v718
    %v783 = vadd.f32 %v565, %v719
    %v784 = vadd.f32 %v570, %v720
    %v785 = vadd.f32 %v575, %v721
    %v786 = vadd.f32 %v580, %v722
    %v787 = vadd.f32 %v585, %v723
    %v788 = vadd.f32 %v590, %v724
    %v789 = vadd.f32 %v595, %v725
    %v790 = vadd.f32 %v600, %v726
    %v791 = vadd.f32 %v605, %v727
    %v792 = vadd.f32 %v610, %v728
    %v793 = vadd.f32 %v615, %v729
    %v794 = vadd.f32 %v620, %v730
    %v795 = vadd.f32 %v625, %v731
    %v796 = vadd.f32 %v630, %v732
    %v797 = vadd.f32 %v635, %v733
    %v798 = vadd.f32 %v640, %v734
    %v799 = vadd.f32 %v645, %v735
    %v800 = vadd.f32 %v650, %v736
    %v801 = vadd.f32 %v655, %v737
    %v802 = vadd.f32 %v660, %v738
    %v803 = vadd.f32 %v665, %v739
    %v804 = vadd.f32 %v670, %v740
    %v805 = vadd.f32 %v675, %v741
    %vm806 = vcmask 31744
    %807 = vst.msk [vmem:[%s4] sm:$0xff] %vm806, %v742
    %808 = vst.msk [vmem:[%s4 + $0x8] sm:$0xff] %vm806, %v743
    %809 = vst.msk [vmem:[%s4 + $0x10] sm:$0xff] %vm806, %v744
    %810 = vst.msk [vmem:[%s4 + $0x18] sm:$0xff] %vm806, %v745
    %811 = vst.msk [vmem:[%s4 + $0x20] sm:$0xff] %vm806, %v746
    %812 = vst.msk [vmem:[%s4 + $0x28] sm:$0xff] %vm806, %v747
    %813 = vst.msk [vmem:[%s4 + $0x30] sm:$0xff] %vm806, %v748
    %814 = vst.msk [vmem:[%s4 + $0x38] sm:$0xff] %vm806, %v749
    %815 = vst.msk [vmem:[%s4 + $0x40] sm:$0xff] %vm806, %v750
    %816 = vst.msk [vmem:[%s4 + $0x48] sm:$0xff] %vm806, %v751
    %817 = vst.msk [vmem:[%s4 + $0x50] sm:$0xff] %vm806, %v752
    %818 = vst.msk [vmem:[%s4 + $0x58] sm:$0xff] %vm806, %v753
    %819 = vst.msk [vmem:[%s4 + $0x60] sm:$0xff] %vm806, %v754
    %820 = vst.msk [vmem:[%s4 + $0x68] sm:$0xff] %vm806, %v755
    %821 = vst.msk [vmem:[%s4 + $0x70] sm:$0xff] %vm806, %v756
    %822 = vst.msk [vmem:[%s4 + $0x78] sm:$0xff] %vm806, %v757
    %823 = vst.msk [vmem:[%s4 + $0x80] sm:$0xff] %vm806, %v758
    %824 = vst.msk [vmem:[%s4 + $0x88] sm:$0xff] %vm806, %v759
    %825 = vst.msk [vmem:[%s4 + $0x90] sm:$0xff] %vm806, %v760
    %826 = vst.msk [vmem:[%s4 + $0x98] sm:$0xff] %vm806, %v761
    %827 = vst.msk [vmem:[%s4 + $0xa0] sm:$0xff] %vm806, %v762
    %828 = vst.msk [vmem:[%s4 + $0xa8] sm:$0xff] %vm806, %v763
    %829 = vst.msk [vmem:[%s4 + $0xb0] sm:$0xff] %vm806, %v764
    %830 = vst.msk [vmem:[%s4 + $0xb8] sm:$0xff] %vm806, %v765
    %831 = vst.msk [vmem:[%s4 + $0xc0] sm:$0xff] %vm806, %v766
    %832 = vst.msk [vmem:[%s4 + $0xc8] sm:$0xff] %vm806, %v767
    %833 = vst.msk [vmem:[%s4 + $0xd0] sm:$0xff] %vm806, %v768
    %834 = vst.msk [vmem:[%s4 + $0xd8] sm:$0xff] %vm806, %v769
    %835 = vst.msk [vmem:[%s4 + $0xe0] sm:$0xff] %vm806, %v770
    %836 = vst.msk [vmem:[%s4 + $0xe8] sm:$0xff] %vm806, %v771
    %837 = vst.msk [vmem:[%s4 + $0xf0] sm:$0xff] %vm806, %v772
    %838 = vst.msk [vmem:[%s4 + $0xf8] sm:$0xff] %vm806, %v773
    %839 = vst.msk [vmem:[%s4 + $0x100] sm:$0xff] %vm806, %v774
    %840 = vst.msk [vmem:[%s4 + $0x108] sm:$0xff] %vm806, %v775
    %841 = vst.msk [vmem:[%s4 + $0x110] sm:$0xff] %vm806, %v776
    %842 = vst.msk [vmem:[%s4 + $0x118] sm:$0xff] %vm806, %v777
    %843 = vst.msk [vmem:[%s4 + $0x120] sm:$0xff] %vm806, %v778
    %844 = vst.msk [vmem:[%s4 + $0x128] sm:$0xff] %vm806, %v779
    %845 = vst.msk [vmem:[%s4 + $0x130] sm:$0xff] %vm806, %v780
    %846 = vst.msk [vmem:[%s4 + $0x138] sm:$0xff] %vm806, %v781
    %847 = vst.msk [vmem:[%s4 + $0x140] sm:$0xff] %vm806, %v782
    %848 = vst.msk [vmem:[%s4 + $0x148] sm:$0xff] %vm806, %v783
    %849 = vst.msk [vmem:[%s4 + $0x150] sm:$0xff] %vm806, %v784
    %850 = vst.msk [vmem:[%s4 + $0x158] sm:$0xff] %vm806, %v785
    %851 = vst.msk [vmem:[%s4 + $0x160] sm:$0xff] %vm806, %v786
    %852 = vst.msk [vmem:[%s4 + $0x168] sm:$0xff] %vm806, %v787
    %853 = vst.msk [vmem:[%s4 + $0x170] sm:$0xff] %vm806, %v788
    %854 = vst.msk [vmem:[%s4 + $0x178] sm:$0xff] %vm806, %v789
    %855 = vst.msk [vmem:[%s4 + $0x180] sm:$0xff] %vm806, %v790
    %856 = vst.msk [vmem:[%s4 + $0x188] sm:$0xff] %vm806, %v791
    %857 = vst.msk [vmem:[%s4 + $0x190] sm:$0xff] %vm806, %v792
    %858 = vst.msk [vmem:[%s4 + $0x198] sm:$0xff] %vm806, %v793
    %859 = vst.msk [vmem:[%s4 + $0x1a0] sm:$0xff] %vm806, %v794
    %860 = vst.msk [vmem:[%s4 + $0x1a8] sm:$0xff] %vm806, %v795
    %861 = vst.msk [vmem:[%s4 + $0x1b0] sm:$0xff] %vm806, %v796
    %862 = vst.msk [vmem:[%s4 + $0x1b8] sm:$0xff] %vm806, %v797
    %863 = vst.msk [vmem:[%s4 + $0x1c0] sm:$0xff] %vm806, %v798
    %864 = vst.msk [vmem:[%s4 + $0x1c8] sm:$0xff] %vm806, %v799
    %865 = vst.msk [vmem:[%s4 + $0x1d0] sm:$0xff] %vm806, %v800
    %866 = vst.msk [vmem:[%s4 + $0x1d8] sm:$0xff] %vm806, %v801
    %867 = vst.msk [vmem:[%s4 + $0x1e0] sm:$0xff] %vm806, %v802
    %868 = vst.msk [vmem:[%s4 + $0x1e8] sm:$0xff] %vm806, %v803
    %869 = vst.msk [vmem:[%s4 + $0x1f0] sm:$0xff] %vm806, %v804
    %870 = vst.msk [vmem:[%s4 + $0x1f8] sm:$0xff] %vm806, %v805
    %v871 = vmul.f32 %v742, %v742
    %v872 = vmul.f32 %v743, %v743
    %v873 = vmul.f32 %v744, %v744
    %v874 = vmul.f32 %v745, %v745
    %v875 = vmul.f32 %v746, %v746
    %v876 = vmul.f32 %v747, %v747
    %v877 = vmul.f32 %v748, %v748
    %v878 = vmul.f32 %v749, %v749
    %v879 = vmul.f32 %v750, %v750
    %v880 = vmul.f32 %v751, %v751
    %v881 = vmul.f32 %v752, %v752
    %v882 = vmul.f32 %v753, %v753
    %v883 = vmul.f32 %v754, %v754
    %v884 = vmul.f32 %v755, %v755
    %v885 = vmul.f32 %v756, %v756
    %v886 = vmul.f32 %v757, %v757
    %v887 = vmul.f32 %v758, %v758
    %v888 = vmul.f32 %v759, %v759
    %v889 = vmul.f32 %v760, %v760
    %v890 = vmul.f32 %v761, %v761
    %v891 = vmul.f32 %v762, %v762
    %v892 = vmul.f32 %v763, %v763
    %v893 = vmul.f32 %v764, %v764
    %v894 = vmul.f32 %v765, %v765
    %v895 = vmul.f32 %v766, %v766
    %v896 = vmul.f32 %v767, %v767
    %v897 = vmul.f32 %v768, %v768
    %v898 = vmul.f32 %v769, %v769
    %v899 = vmul.f32 %v770, %v770
    %v900 = vmul.f32 %v771, %v771
    %v901 = vmul.f32 %v772, %v772
    %v902 = vmul.f32 %v773, %v773
    %v903 = vmul.f32 %v774, %v774
    %v904 = vmul.f32 %v775, %v775
    %v905 = vmul.f32 %v776, %v776
    %v906 = vmul.f32 %v777, %v777
    %v907 = vmul.f32 %v778, %v778
    %v908 = vmul.f32 %v779, %v779
    %v909 = vmul.f32 %v780, %v780
    %v910 = vmul.f32 %v781, %v781
    %v911 = vmul.f32 %v782, %v782
    %v912 = vmul.f32 %v783, %v783
    %v913 = vmul.f32 %v784, %v784
    %v914 = vmul.f32 %v785, %v785
    %v915 = vmul.f32 %v786, %v786
    %v916 = vmul.f32 %v787, %v787
    %v917 = vmul.f32 %v788, %v788
    %v918 = vmul.f32 %v789, %v789
    %v919 = vmul.f32 %v790, %v790
    %v920 = vmul.f32 %v791, %v791
    %v921 = vmul.f32 %v792, %v792
    %v922 = vmul.f32 %v793, %v793
    %v923 = vmul.f32 %v794, %v794
    %v924 = vmul.f32 %v795, %v795
    %v925 = vmul.f32 %v796, %v796
    %v926 = vmul.f32 %v797, %v797
    %v927 = vmul.f32 %v798, %v798
    %v928 = vmul.f32 %v799, %v799
    %v929 = vmul.f32 %v800, %v800
    %v930 = vmul.f32 %v801, %v801
    %v931 = vmul.f32 %v802, %v802
    %v932 = vmul.f32 %v803, %v803
    %v933 = vmul.f32 %v804, %v804
    %v934 = vmul.f32 %v805, %v805
    %v935 = vsel %vm806, %v871, 0.0
    %v936 = vsel %vm806, %v872, 0.0
    %v937 = vadd.f32 %v935, %v936
    %v938 = vsel %vm806, %v873, 0.0
    %v939 = vadd.f32 %v937, %v938
    %v940 = vsel %vm806, %v874, 0.0
    %v941 = vadd.f32 %v939, %v940
    %v942 = vsel %vm806, %v875, 0.0
    %v943 = vadd.f32 %v941, %v942
    %v944 = vsel %vm806, %v876, 0.0
    %v945 = vadd.f32 %v943, %v944
    %v946 = vsel %vm806, %v877, 0.0
    %v947 = vadd.f32 %v945, %v946
    %v948 = vsel %vm806, %v878, 0.0
    %v949 = vadd.f32 %v947, %v948
    %v950 = vsel %vm806, %v879, 0.0
    %v951 = vadd.f32 %v949, %v950
    %v952 = vsel %vm806, %v880, 0.0
    %v953 = vadd.f32 %v951, %v952
    %v954 = vsel %vm806, %v881, 0.0
    %v955 = vadd.f32 %v953, %v954
    %v956 = vsel %vm806, %v882, 0.0
    %v957 = vadd.f32 %v955, %v956
    %v958 = vsel %vm806, %v883, 0.0
    %v959 = vadd.f32 %v957, %v958
    %v960 = vsel %vm806, %v884, 0.0
    %v961 = vadd.f32 %v959, %v960
    %v962 = vsel %vm806, %v885, 0.0
    %v963 = vadd.f32 %v961, %v962
    %v964 = vsel %vm806, %v886, 0.0
    %v965 = vadd.f32 %v963, %v964
    %v966 = vsel %vm806, %v887, 0.0
    %v967 = vadd.f32 %v965, %v966
    %v968 = vsel %vm806, %v888, 0.0
    %v969 = vadd.f32 %v967, %v968
    %v970 = vsel %vm806, %v889, 0.0
    %v971 = vadd.f32 %v969, %v970
    %v972 = vsel %vm806, %v890, 0.0
    %v973 = vadd.f32 %v971, %v972
    %v974 = vsel %vm806, %v891, 0.0
    %v975 = vadd.f32 %v973, %v974
    %v976 = vsel %vm806, %v892, 0.0
    %v977 = vadd.f32 %v975, %v976
    %v978 = vsel %vm806, %v893, 0.0
    %v979 = vadd.f32 %v977, %v978
    %v980 = vsel %vm806, %v894, 0.0
    %v981 = vadd.f32 %v979, %v980
    %v982 = vsel %vm806, %v895, 0.0
    %v983 = vadd.f32 %v981, %v982
    %v984 = vsel %vm806, %v896, 0.0
    %v985 = vadd.f32 %v983, %v984
    %v986 = vsel %vm806, %v897, 0.0
    %v987 = vadd.f32 %v985, %v986
    %v988 = vsel %vm806, %v898, 0.0
    %v989 = vadd.f32 %v987, %v988
    %v990 = vsel %vm806, %v899, 0.0
    %v991 = vadd.f32 %v989, %v990
    %v992 = vsel %vm806, %v900, 0.0
    %v993 = vadd.f32 %v991, %v992
    %v994 = vsel %vm806, %v901, 0.0
    %v995 = vadd.f32 %v993, %v994
    %v996 = vsel %vm806, %v902, 0.0
    %v997 = vadd.f32 %v995, %v996
    %v998 = vsel %vm806, %v903, 0.0
    %v999 = vadd.f32 %v997, %v998
    %v1000 = vsel %vm806, %v904, 0.0
    %v1001 = vadd.f32 %v999, %v1000
    %v1002 = vsel %vm806, %v905, 0.0
    %v1003 = vadd.f32 %v1001, %v1002
    %v1004 = vsel %vm806, %v906, 0.0
    %v1005 = vadd.f32 %v1003, %v1004
    %v1006 = vsel %vm806, %v907, 0.0
    %v1007 = vadd.f32 %v1005, %v1006
    %v1008 = vsel %vm806, %v908, 0.0
    %v1009 = vadd.f32 %v1007, %v1008
    %v1010 = vsel %vm806, %v909, 0.0
    %v1011 = vadd.f32 %v1009, %v1010
    %v1012 = vsel %vm806, %v910, 0.0
    %v1013 = vadd.f32 %v1011, %v1012
    %v1014 = vsel %vm806, %v911, 0.0
    %v1015 = vadd.f32 %v1013, %v1014
    %v1016 = vsel %vm806, %v912, 0.0
    %v1017 = vadd.f32 %v1015, %v1016
    %v1018 = vsel %vm806, %v913, 0.0
    %v1019 = vadd.f32 %v1017, %v1018
    %v1020 = vsel %vm806, %v914, 0.0
    %v1021 = vadd.f32 %v1019, %v1020
    %v1022 = vsel %vm806, %v915, 0.0
    %v1023 = vadd.f32 %v1021, %v1022
    %v1024 = vsel %vm806, %v916, 0.0
    %v1025 = vadd.f32 %v1023, %v1024
    %v1026 = vsel %vm806, %v917, 0.0
    %v1027 = vadd.f32 %v1025, %v1026
    %v1028 = vsel %vm806, %v918, 0.0
    %v1029 = vadd.f32 %v1027, %v1028
    %v1030 = vsel %vm806, %v919, 0.0
    %v1031 = vadd.f32 %v1029, %v1030
    %v1032 = vsel %vm806, %v920, 0.0
    %v1033 = vadd.f32 %v1031, %v1032
    %v1034 = vsel %vm806, %v921, 0.0
    %v1035 = vadd.f32 %v1033, %v1034
    %v1036 = vsel %vm806, %v922, 0.0
    %v1037 = vadd.f32 %v1035, %v1036
    %v1038 = vsel %vm806, %v923, 0.0
    %v1039 = vadd.f32 %v1037, %v1038
    %v1040 = vsel %vm806, %v924, 0.0
    %v1041 = vadd.f32 %v1039, %v1040
    %v1042 = vsel %vm806, %v925, 0.0
    %v1043 = vadd.f32 %v1041, %v1042
    %v1044 = vsel %vm806, %v926, 0.0
    %v1045 = vadd.f32 %v1043, %v1044
    %v1046 = vsel %vm806, %v927, 0.0
    %v1047 = vadd.f32 %v1045, %v1046
    %v1048 = vsel %vm806, %v928, 0.0
    %v1049 = vadd.f32 %v1047, %v1048
    %v1050 = vsel %vm806, %v929, 0.0
    %v1051 = vadd.f32 %v1049, %v1050
    %v1052 = vsel %vm806, %v930, 0.0
    %v1053 = vadd.f32 %v1051, %v1052
    %v1054 = vsel %vm806, %v931, 0.0
    %v1055 = vadd.f32 %v1053, %v1054
    %v1056 = vsel %vm806, %v932, 0.0
    %v1057 = vadd.f32 %v1055, %v1056
    %v1058 = vsel %vm806, %v933, 0.0
    %v1059 = vadd.f32 %v1057, %v1058
    %v1060 = vsel %vm806, %v934, 0.0
    %v1061 = vadd.f32 %v1059, %v1060
    %1062 = vadd.xlane.f32.xlu0 %v1061
    %v1063 = vpop.xlane.xlu0 %1062
    %v1064 = vrot.slane %v1063, 4
    %v1065 = vadd.f32 %v1063, %v1064
    %v1066 = vrot.slane %v1065, 2
    %v1067 = vadd.f32 %v1065, %v1066
    %v1068 = vrot.slane %v1067, 1
    %v1069 = vadd.f32 %v1067, %v1068
    %s1070 = vtos %v1069
    %v1071 = vstv %s1070
    %vm1072 = vcmask 0
    %1073 = vst.msk [vmem:[#allocation2] sm:$0x1] %vm1072, %v1071
    // Predicated region
    $region18: #{resblock_forward.4} parent=1 // pred_check
      _
    $region19: #{resblock_forward.4} parent=1 // pred_check_branch
      %1075 = sbr.rel (0) target = $region21
    $region20: #{resblock_forward.4} parent=1 // pred_region
      _
    $region21: #{resblock_forward.4} parent=1 // pred_fallthru
      _
    // Predicated region
    $region22: #{resblock_forward.4} parent=1 // pred_check
      _
    $region23: #{resblock_forward.4} parent=1 // pred_check_branch
      %1077 = sbr.rel (0) target = $region25
    $region24: #{resblock_forward.4} parent=1 // pred_region
      %s1079 = ssub.s32 16, 16
      %1080 = vsyncadd [#allocation3], %s1079
      %s1082 = sshll.u32 [#allocation2], 4
      %s1083 = int_to_ptr.vmem [resolvable:$true] %s1082
      %1085 = dma.vmem_to_hbm [thread:$0]  %s1083, 16, %s5, [#allocation3]
    $region25: #{resblock_forward.4} parent=1 // pred_fallthru
      _
    // Predicated region
    $region26: #{resblock_forward.4} parent=1 // pred_check
      _
    $region27: #{resblock_forward.4} parent=1 // pred_check_branch
      %1087 = sbr.rel (0) target = $region29
    $region28: #{resblock_forward.4} parent=1 // pred_region
      _
    $region29: #{resblock_forward.4} parent=1 // pred_fallthru
      _
    // Predicated region
    $region30: #{resblock_forward.4} parent=1 // pred_check
      _
    $region31: #{resblock_forward.4} parent=1 // pred_check_branch
      %1089 = sbr.rel (0) target = $region33
    $region32: #{resblock_forward.4} parent=1 // pred_region
      %1090 = dma.done [#allocation3], 16
    $region33: #{resblock_forward.4} parent=1 // pred_fallthru
      _
    %1091 = vsyncpa [#allocation3], 1

</llo_original>
